<compile_context>
chip_gen: v7x
topology: tpu7x:2x2x1
jax: 0.10.0
libtpu: 0.0.40
codegen_flags: <defaults>
</compile_context>

<pallas_src>
import functools

import jax
import jax.numpy as jnp
from jax import lax
from jax.experimental import pallas as pl
from jax.experimental.pallas import tpu as pltpu


def _sae_kernel(h_ref, w_enc_ref, w_dec_ref, b_enc_ref, b_dec_ref,
                acts_ref, hrec_ref, recon_ref, sparse_ref,
                acc_ref, l1_ref, hc_ref):
    """One (instance, batch-tile, feature-tile) step of the SAE forward.

    h_ref     : (bt, d_in)      input activations (resident across feature tiles)
    w_enc_ref : (d_in, kt)      encoder weight tile
    w_dec_ref : (kt, d_in)      decoder weight tile
    b_enc_ref : (1, kt)         encoder bias tile
    b_dec_ref : (1, d_in)       decoder bias (resident)
    acts_ref  : (bt, kt)   out  feature activations tile
    hrec_ref  : (bt, d_in) out  reconstruction      (written at last feature tile)
    recon_ref : (bt, 1)    out  per-sample MSE      (written at last feature tile)
    sparse_ref: (bt, 1)    out  per-sample L1 norm  (written at last feature tile)
    acc_ref   : (bt, d_in) f32  VMEM decoder accumulator
    l1_ref    : (bt, 1)    f32  VMEM L1 accumulator
    hc_ref    : (bt, d_in)      cached centered input (h - b_dec), MXU dtype
    """
    k = pl.program_id(2)
    nk = pl.num_programs(2)

    @pl.when(k == 0)
    def _init():
        acc_ref[...] = jnp.zeros_like(acc_ref)
        l1_ref[...] = jnp.zeros_like(l1_ref)
        # Center the input once per (instance, batch-tile); reused by every
        # feature tile below.
        h_f32 = h_ref[...].astype(jnp.float32)
        hc_ref[...] = (h_f32 - b_dec_ref[...].astype(jnp.float32)).astype(hc_ref.dtype)

    # Encoder tile on the MXU: (bt, d_in) @ (d_in, kt), f32 accumulation.
    pre = jnp.dot(hc_ref[...], w_enc_ref[...], preferred_element_type=jnp.float32)
    acts = jnp.maximum(pre + b_enc_ref[...].astype(jnp.float32), 0.0)
    acts_ref[...] = acts.astype(acts_ref.dtype)

    # Decoder partial product, accumulated in f32 VMEM across feature tiles.
    acc_ref[...] += jnp.dot(acts.astype(w_dec_ref.dtype), w_dec_ref[...],
                            preferred_element_type=jnp.float32)
    # Per-sample L1 partial sum (ReLU output => abs == identity).
    l1_ref[...] += jnp.sum(acts, axis=-1, keepdims=True)

    @pl.when(k == nk - 1)
    def _finalize():
        b_dec = b_dec_ref[...].astype(jnp.float32)
        h_rec = acc_ref[...] + b_dec
        hrec_ref[...] = h_rec.astype(hrec_ref.dtype)
        diff = h_ref[...].astype(jnp.float32) - h_rec
        recon_ref[...] = jnp.mean(diff * diff, axis=-1,
                                  keepdims=True).astype(recon_ref.dtype)
        sparse_ref[...] = l1_ref[...].astype(sparse_ref.dtype)


def _auto_batch_tile(batch):
    """Full batch if small; otherwise the largest multiple-of-128 divisor <= 512."""
    if batch <= 512:
        return batch
    t = 512
    while t >= 128:
        if batch % t == 0:
            return t
        t -= 128
    return batch  # no nice divisor: full batch is always layout-legal


@functools.partial(jax.jit, static_argnames=("l1_coeff", "batch_tile", "feature_tile"))
def sae_forward(h, W_enc, W_dec, b_enc, b_dec, l1_coeff=0.2,
                batch_tile=None, feature_tile=None):
    """SAE forward pass.

    h:     [batch, inst, d_in]        W_enc: [inst, d_in, d_sae]
    W_dec: [inst, d_sae, d_in]        b_enc: [inst, d_sae]   b_dec: [inst, d_in]

    Returns (loss_dict, loss, acts, h_reconstructed) matching the PyTorch module.
    """
    batch, n_inst, d_in = h.shape
    d_sae = W_enc.shape[-1]

    if n_inst > 1 and (d_in % 128 != 0 or d_sae % 128 != 0):
        # TODO(synk): pad d_in / d_sae up to multiples of 128 for odd sizes.
        raise NotImplementedError(
            "n_inst > 1 requires d_in and d_sae to be multiples of 128 for the "
            "lane-dense flattened layout.")

    h_bytes = jnp.dtype(h.dtype).itemsize
    w_bytes = jnp.dtype(W_enc.dtype).itemsize
    out_dtype = h.dtype
    o_bytes = jnp.dtype(out_dtype).itemsize

    # ---- batch (M) tile ----------------------------------------------------
    if batch_tile is not None:
        bt = int(batch_tile)
        if batch % bt or (bt % 8 and bt != batch):
            raise ValueError("batch_tile must divide batch and be a multiple of 8.")
    else:
        bt = _auto_batch_tile(batch)

    # ---- VMEM budget, re-derived per generation (64 MiB v7x, 128 MiB v5e/v6e)
    try:
        vmem_cap = int(pltpu.get_tpu_info().vmem_capacity_bytes)
    except Exception:
        vmem_cap = 64 * 1024 * 1024  # conservative default: v7x per-core VMEM
    vmem_budget = int(vmem_cap * 0.55)

    def _step_vmem(kt_):
        dbl = 2  # double-buffered pipeline stages
        return (dbl * (bt * d_in * h_bytes          # h tile
                       + d_in * kt_ * w_bytes       # W_enc tile
                       + kt_ * d_in * w_bytes       # W_dec tile
                       + kt_ * w_bytes              # b_enc tile
                       + d_in * w_bytes             # b_dec tile
                       + bt * kt_ * o_bytes         # acts tile
                       + bt * d_in * o_bytes        # h_rec tile
                       + 2 * bt * 4)                # per-sample loss tiles
                + bt * (d_in + 128) * 4             # f32 scratch accumulators
                + bt * d_in * w_bytes)              # cached centered-h scratch

    # ---- feature (d_sae) tile ----------------------------------------------
    if feature_tile is not None:
        kt = int(feature_tile)
        if d_sae % kt or (kt % 128 and kt != d_sae):
            raise ValueError("feature_tile must divide d_sae and be a multiple "
                             "of 128 (or equal d_sae).")
    else:
        legal = ([d_sae] if d_sae <= 4096 else []) + \
                [t for t in range(4096, 127, -128) if t < d_sae and d_sae % t == 0]
        legal = legal or [d_sae]
        kt = legal[-1]                       # smallest legal tile as fallback
        for cand in legal:                   # largest tile that fits the budget
            if _step_vmem(cand) <= vmem_budget:
                kt = cand
                break

    nb = batch // bt
    nk = d_sae // kt
    vmem_limit = int(min(vmem_cap * 0.8,
                         max(32 * 1024 * 1024, _step_vmem(kt) + (4 << 20))))

    # ---- free (layout-preserving) reshapes: no HBM transposes ---------------
    h_flat = h.reshape(batch, n_inst * d_in)
    b_enc3 = b_enc.reshape(n_inst, 1, d_sae)
    b_dec3 = b_dec.reshape(n_inst, 1, d_in)

    out_shapes = (
        jax.ShapeDtypeStruct((batch, n_inst * d_sae), out_dtype),  # acts (flat)
        jax.ShapeDtypeStruct((batch, n_inst * d_in), out_dtype),   # h_rec (flat)
        jax.ShapeDtypeStruct((n_inst, batch, 1), jnp.float32),     # recon MSE
        jax.ShapeDtypeStruct((n_inst, batch, 1), jnp.float32),     # L1 sparsity
    )

    in_specs = [
        pl.BlockSpec((bt, d_in), lambda i, b, k: (b, i)),            # h
        pl.BlockSpec((None, d_in, kt), lambda i, b, k: (i, 0, k)),   # W_enc
        pl.BlockSpec((None, kt, d_in), lambda i, b, k: (i, k, 0)),   # W_dec
        pl.BlockSpec((None, 1, kt), lambda i, b, k: (i, 0, k)),      # b_enc
        pl.BlockSpec((None, 1, d_in), lambda i, b, k: (i, 0, 0)),    # b_dec
    ]
    out_specs = (
        pl.BlockSpec((bt, kt), lambda i, b, k: (b, i * nk + k)),     # acts
        pl.BlockSpec((bt, d_in), lambda i, b, k: (b, i)),            # h_rec
        pl.BlockSpec((None, bt, 1), lambda i, b, k: (i, b, 0)),      # recon
        pl.BlockSpec((None, bt, 1), lambda i, b, k: (i, b, 0)),      # sparsity
    )

    acts_flat, hrec_flat, recon_ib, sparse_ib = pl.pallas_call(
        _sae_kernel,
        out_shape=out_shapes,
        grid_spec=pltpu.PrefetchScalarGridSpec(
            num_scalar_prefetch=0,
            grid=(n_inst, nb, nk),
            in_specs=in_specs,
            out_specs=out_specs,
            scratch_shapes=[
                pltpu.VMEM((bt, d_in), jnp.float32),   # decoder accumulator
                pltpu.VMEM((bt, 1), jnp.float32),      # L1 accumulator
                pltpu.VMEM((bt, d_in), W_enc.dtype),   # cached centered h
            ],
        ),
        compiler_params=pltpu.CompilerParams(
            dimension_semantics=("parallel", "parallel", "arbitrary"),
            vmem_limit_bytes=vmem_limit,
        ),
    )(h_flat, W_enc, W_dec, b_enc3, b_dec3)

    acts = acts_flat.reshape(batch, n_inst, d_sae)
    h_rec = hrec_flat.reshape(batch, n_inst, d_in)
    # Tiny [inst, batch] -> [batch, inst] fix-ups (n_inst*batch elements).
    reconstruction_loss = jnp.transpose(recon_ib[:, :, 0])
    sparsity = jnp.transpose(sparse_ib[:, :, 0])

    loss_dict = {"L_reconstruction": reconstruction_loss, "L_sparsity": sparsity}
    loss = (jnp.sum(jnp.mean(reconstruction_loss, axis=0))
            + l1_coeff * jnp.sum(jnp.mean(sparsity, axis=0)))
    return loss_dict, loss, acts, h_rec


def _reference_forward(h, W_enc, W_dec, b_enc, b_dec, l1_coeff=0.2):
    """Plain-JAX reference mirroring the PyTorch einsums (for sanity checks)."""
    hp = lax.Precision.HIGHEST
    acts = jnp.einsum("ihf,bih->bif", W_enc, h - b_dec[None], precision=hp)
    acts = jax.nn.relu(acts + b_enc[None])
    h_rec = jnp.einsum("ifh,bif->bih", W_dec, acts, precision=hp) + b_dec[None]
    recon = jnp.mean((h - h_rec) ** 2, axis=-1)
    sparsity = jnp.sum(jnp.abs(acts), axis=-1)
    loss = (jnp.sum(jnp.mean(recon, axis=0))
            + l1_coeff * jnp.sum(jnp.mean(sparsity, axis=0)))
    return recon, sparsity, loss, acts, h_rec


if __name__ == "__main__":
    # Small deterministic setup consistent with SAEConfig(d_in, d_sae, n_inst).
    batch, n_inst, d_in, d_sae = 64, 2, 256, 512
    l1_coeff = 0.2

    key = jax.random.PRNGKey(0)
    k_h, k_enc, k_dec = jax.random.split(key, 3)

    # Kaiming-uniform-style deterministic init (synthetic, not a checkpoint).
    bound_enc = (6.0 / d_in) ** 0.5
    bound_dec = (6.0 / d_sae) ** 0.5
    W_enc = jax.random.uniform(k_enc, (n_inst, d_in, d_sae), jnp.float32,
                               -bound_enc, bound_enc)
    W_dec = jax.random.uniform(k_dec, (n_inst, d_sae, d_in), jnp.float32,
                               -bound_dec, bound_dec)
    b_enc = jnp.zeros((n_inst, d_sae), jnp.float32)
    b_dec = jnp.zeros((n_inst, d_in), jnp.float32)
    h = jax.random.normal(k_h, (batch, n_inst, d_in), jnp.float32)

    recon_r, sparse_r, loss_r, acts_r, hrec_r = _reference_forward(
        h, W_enc, W_dec, b_enc, b_dec, l1_coeff=l1_coeff)

    # 1) auto-tiled f32 run.
    loss_dict, loss, acts, h_rec = sae_forward(
        h, W_enc, W_dec, b_enc, b_dec, l1_coeff=l1_coeff)
    jax.block_until_ready((loss, acts, h_rec))

    # 2) forced multi-tile run: exercises the feature-axis accumulator path.
    loss_dict2, loss2, acts2, hrec2 = sae_forward(
        h, W_enc, W_dec, b_enc, b_dec, l1_coeff=l1_coeff,
        batch_tile=32, feature_tile=128)
    jax.block_until_ready(loss2)

    for ld, ls, ac, hr in ((loss_dict, loss, acts, h_rec),
                           (loss_dict2, loss2, acts2, hrec2)):
        assert ac.shape == (batch, n_inst, d_sae)
        assert hr.shape == (batch, n_inst, d_in)
        assert jnp.allclose(ac, acts_r, atol=1e-4, rtol=1e-4)
        assert jnp.allclose(hr, hrec_r, atol=1e-4, rtol=1e-4)
        assert jnp.allclose(ld["L_reconstruction"], recon_r, atol=1e-4, rtol=1e-4)
        assert jnp.allclose(ld["L_sparsity"], sparse_r, atol=1e-3, rtol=1e-4)
        assert jnp.allclose(ls, loss_r, atol=1e-3, rtol=1e-4)

    # 3) bf16 smoke test: halves weight/activation HBM traffic (loose numerics).
    bf = jnp.bfloat16
    ld_b, loss_b, acts_b, hrec_b = sae_forward(
        h.astype(bf), W_enc.astype(bf), W_dec.astype(bf),
        b_enc.astype(bf), b_dec.astype(bf), l1_coeff=l1_coeff)
    jax.block_until_ready(loss_b)
    assert acts_b.dtype == bf and hrec_b.dtype == bf
    assert bool(jnp.isfinite(loss_b))
    assert bool(jnp.all(jnp.isfinite(ld_b["L_reconstruction"])))
    assert bool(jnp.all(jnp.isfinite(ld_b["L_sparsity"])))

    print("KERNEL_OK")
</pallas_src>

<mosaic_0001>
module attributes {stable_mosaic.version = 11 : i64} {
  func.func @_sae_kernel(%arg0: i32, %arg1: i32, %arg2: i32, %arg3: memref<64x256xf32, #tpu.memory_space<vmem>>, %arg4: memref<1x256x512xf32, #tpu.memory_space<vmem>>, %arg5: memref<1x512x256xf32, #tpu.memory_space<vmem>>, %arg6: memref<1x1x512xf32, #tpu.memory_space<vmem>>, %arg7: memref<1x1x256xf32, #tpu.memory_space<vmem>>, %arg8: memref<64x512xf32, #tpu.memory_space<vmem>>, %arg9: memref<64x256xf32, #tpu.memory_space<vmem>>, %arg10: memref<1x64x1xf32, #tpu.memory_space<vmem>>, %arg11: memref<1x64x1xf32, #tpu.memory_space<vmem>>, %arg12: memref<64x256xf32, #tpu.memory_space<vmem>>, %arg13: memref<64x1xf32, #tpu.memory_space<vmem>>, %arg14: memref<64x256xf32, #tpu.memory_space<vmem>>) attributes {dimension_semantics = [#tpu.dimension_semantics<parallel>, #tpu.dimension_semantics<parallel>, #tpu.dimension_semantics<arbitrary>], iteration_bounds = array<i64: 2, 1, 1>, scalar_prefetch = 0 : i64, scratch_operands = 3 : i64, tpu.core_type = #tpu.core_type<tc>, window_params = [{transform_indices = @transform_0, window_bounds = array<i64: 64, 256>}, {transform_indices = @transform_1, window_bounds = array<i64: 1, 256, 512>}, {transform_indices = @transform_2, window_bounds = array<i64: 1, 512, 256>}, {transform_indices = @transform_3, window_bounds = array<i64: 1, 1, 512>}, {transform_indices = @transform_4, window_bounds = array<i64: 1, 1, 256>}, {transform_indices = @transform_5, window_bounds = array<i64: 64, 512>}, {transform_indices = @transform_6, window_bounds = array<i64: 64, 256>}, {transform_indices = @transform_7, window_bounds = array<i64: 1, 64, 1>}, {transform_indices = @transform_8, window_bounds = array<i64: 1, 64, 1>}]} {
    %c0_i32 = arith.constant 0 : i32
    %0 = arith.cmpi eq, %arg2, %c0_i32 : i32
    %1 = arith.extui %0 : i1 to i32
    %c0_i32_0 = arith.constant 0 : i32
    %2 = arith.cmpi ne, %1, %c0_i32_0 : i32
    scf.if %2 {
      %cst_26 = arith.constant 0.000000e+00 : f32
      %28 = vector.broadcast %cst_26 : f32 to vector<64x256xf32>
      %c0_27 = arith.constant 0 : index
      %c0_28 = arith.constant 0 : index
      %29 = vector.load %arg12[%c0_27, %c0_28] : memref<64x256xf32, #tpu.memory_space<vmem>>, vector<64x256xf32>
      tpu.vector_store %arg12[%c0_27, %c0_28], %28 {strides = array<i32>} : memref<64x256xf32, #tpu.memory_space<vmem>>, vector<64x256xf32>,
      %cst_29 = arith.constant 0.000000e+00 : f32
      %30 = vector.broadcast %cst_29 : f32 to vector<64x1xf32>
      %c0_30 = arith.constant 0 : index
      %c0_31 = arith.constant 0 : index
      %31 = vector.load %arg13[%c0_30, %c0_31] : memref<64x1xf32, #tpu.memory_space<vmem>>, vector<64x1xf32>
      tpu.vector_store %arg13[%c0_30, %c0_31], %30 {strides = array<i32>} : memref<64x1xf32, #tpu.memory_space<vmem>>, vector<64x1xf32>,
      %c0_32 = arith.constant 0 : index
      %c0_33 = arith.constant 0 : index
      %32 = vector.load %arg3[%c0_32, %c0_33] : memref<64x256xf32, #tpu.memory_space<vmem>>, vector<64x256xf32>
      %c0_34 = arith.constant 0 : index
      %c0_35 = arith.constant 0 : index
      %c0_36 = arith.constant 0 : index
      %33 = vector.load %arg7[%c0_34, %c0_35, %c0_36] : memref<1x1x256xf32, #tpu.memory_space<vmem>>, vector<1x1x256xf32>
      %34 = vector.shape_cast %33 : vector<1x1x256xf32> to vector<1x256xf32>
      %35 = vector.broadcast %34 : vector<1x256xf32> to vector<64x256xf32>
      %36 = arith.subf %32, %35 : vector<64x256xf32>
      %c0_37 = arith.constant 0 : index
      %c0_38 = arith.constant 0 : index
      %37 = vector.load %arg14[%c0_37, %c0_38] : memref<64x256xf32, #tpu.memory_space<vmem>>, vector<64x256xf32>
      tpu.vector_store %arg14[%c0_37, %c0_38], %36 {strides = array<i32>} : memref<64x256xf32, #tpu.memory_space<vmem>>, vector<64x256xf32>,
    } else {
    }
    %c0 = arith.constant 0 : index
    %c0_1 = arith.constant 0 : index
    %3 = vector.load %arg14[%c0, %c0_1] : memref<64x256xf32, #tpu.memory_space<vmem>>, vector<64x256xf32>
    %c0_2 = arith.constant 0 : index
    %c0_3 = arith.constant 0 : index
    %c0_4 = arith.constant 0 : index
    %4 = vector.load %arg4[%c0_2, %c0_3, %c0_4] : memref<1x256x512xf32, #tpu.memory_space<vmem>>, vector<1x256x512xf32>
    %5 = vector.shape_cast %4 : vector<1x256x512xf32> to vector<256x512xf32>
    %cst = arith.constant dense<0.000000e+00> : vector<64x512xf32>
    %6 = tpu.matmul %3, %5, %cst {dimension_numbers = #tpu.dot_dimension_numbers<[1], [0], [0], [1], [0, 0, 1, 1], [], []>} : vector<64x256xf32>, vector<256x512xf32>, vector<64x512xf32> -> vector<64x512xf32>
    %c0_5 = arith.constant 0 : index
    %c0_6 = arith.constant 0 : index
    %c0_7 = arith.constant 0 : index
    %7 = vector.load %arg6[%c0_5, %c0_6, %c0_7] : memref<1x1x512xf32, #tpu.memory_space<vmem>>, vector<1x1x512xf32>
    %8 = vector.shape_cast %7 : vector<1x1x512xf32> to vector<1x512xf32>
    %9 = vector.broadcast %8 : vector<1x512xf32> to vector<64x512xf32>
    %10 = arith.addf %6, %9 : vector<64x512xf32>
    %cst_8 = arith.constant 0.000000e+00 : f32
    %11 = vector.broadcast %cst_8 : f32 to vector<64x512xf32>
    %12 = arith.maximumf %10, %11 : vector<64x512xf32>
    %c0_9 = arith.constant 0 : index
    %c0_10 = arith.constant 0 : index
    %13 = vector.load %arg8[%c0_9, %c0_10] : memref<64x512xf32, #tpu.memory_space<vmem>>, vector<64x512xf32>
    tpu.vector_store %arg8[%c0_9, %c0_10], %12 {strides = array<i32>} : memref<64x512xf32, #tpu.memory_space<vmem>>, vector<64x512xf32>,
    %c0_11 = arith.constant 0 : index
    %c0_12 = arith.constant 0 : index
    %14 = vector.load %arg12[%c0_11, %c0_12] : memref<64x256xf32, #tpu.memory_space<vmem>>, vector<64x256xf32>
    %c0_13 = arith.constant 0 : index
    %c0_14 = arith.constant 0 : index
    %c0_15 = arith.constant 0 : index
    %15 = vector.load %arg5[%c0_13, %c0_14, %c0_15] : memref<1x512x256xf32, #tpu.memory_space<vmem>>, vector<1x512x256xf32>
    %16 = vector.shape_cast %15 : vector<1x512x256xf32> to vector<512x256xf32>
    %cst_16 = arith.constant dense<0.000000e+00> : vector<64x256xf32>
    %17 = tpu.matmul %12, %16, %cst_16 {dimension_numbers = #tpu.dot_dimension_numbers<[1], [0], [0], [1], [0, 0, 1, 1], [], []>} : vector<64x512xf32>, vector<512x256xf32>, vector<64x256xf32> -> vector<64x256xf32>
    %18 = arith.addf %14, %17 : vector<64x256xf32>
    %c0_17 = arith.constant 0 : index
    %c0_18 = arith.constant 0 : index
    %19 = vector.load %arg12[%c0_17, %c0_18] : memref<64x256xf32, #tpu.memory_space<vmem>>, vector<64x256xf32>
    tpu.vector_store %arg12[%c0_17, %c0_18], %18 {strides = array<i32>} : memref<64x256xf32, #tpu.memory_space<vmem>>, vector<64x256xf32>,
    %c0_19 = arith.constant 0 : index
    %c0_20 = arith.constant 0 : index
    %20 = vector.load %arg13[%c0_19, %c0_20] : memref<64x1xf32, #tpu.memory_space<vmem>>, vector<64x1xf32>
    %cst_21 = arith.constant dense<0.000000e+00> : vector<64xf32>
    %21 = vector.multi_reduction <add>, %12, %cst_21 [1] : vector<64x512xf32> to vector<64xf32>
    %22 = vector.shape_cast %21 : vector<64xf32> to vector<64x1xf32>
    %23 = arith.addf %20, %22 : vector<64x1xf32>
    %c0_22 = arith.constant 0 : index
    %c0_23 = arith.constant 0 : index
    %24 = vector.load %arg13[%c0_22, %c0_23] : memref<64x1xf32, #tpu.memory_space<vmem>>, vector<64x1xf32>
    tpu.vector_store %arg13[%c0_22, %c0_23], %23 {strides = array<i32>} : memref<64x1xf32, #tpu.memory_space<vmem>>, vector<64x1xf32>,
    %c0_i32_24 = arith.constant 0 : i32
    %25 = arith.cmpi eq, %arg2, %c0_i32_24 : i32
    %26 = arith.extui %25 : i1 to i32
    %c0_i32_25 = arith.constant 0 : i32
    %27 = arith.cmpi ne, %26, %c0_i32_25 : i32
    scf.if %27 {
      %c0_26 = arith.constant 0 : index
      %c0_27 = arith.constant 0 : index
      %c0_28 = arith.constant 0 : index
      %28 = vector.load %arg7[%c0_26, %c0_27, %c0_28] : memref<1x1x256xf32, #tpu.memory_space<vmem>>, vector<1x1x256xf32>
      %29 = vector.shape_cast %28 : vector<1x1x256xf32> to vector<1x256xf32>
      %c0_29 = arith.constant 0 : index
      %c0_30 = arith.constant 0 : index
      %30 = vector.load %arg12[%c0_29, %c0_30] : memref<64x256xf32, #tpu.memory_space<vmem>>, vector<64x256xf32>
      %31 = vector.broadcast %29 : vector<1x256xf32> to vector<64x256xf32>
      %32 = arith.addf %30, %31 : vector<64x256xf32>
      %c0_31 = arith.constant 0 : index
      %c0_32 = arith.constant 0 : index
      %33 = vector.load %arg9[%c0_31, %c0_32] : memref<64x256xf32, #tpu.memory_space<vmem>>, vector<64x256xf32>
      tpu.vector_store %arg9[%c0_31, %c0_32], %32 {strides = array<i32>} : memref<64x256xf32, #tpu.memory_space<vmem>>, vector<64x256xf32>,
      %c0_33 = arith.constant 0 : index
      %c0_34 = arith.constant 0 : index
      %34 = vector.load %arg3[%c0_33, %c0_34] : memref<64x256xf32, #tpu.memory_space<vmem>>, vector<64x256xf32>
      %35 = arith.subf %34, %32 : vector<64x256xf32>
      %36 = arith.mulf %35, %35 : vector<64x256xf32>
      %cst_35 = arith.constant dense<0.000000e+00> : vector<64xf32>
      %37 = vector.multi_reduction <add>, %36, %cst_35 [1] : vector<64x256xf32> to vector<64xf32>
      %38 = vector.shape_cast %37 : vector<64xf32> to vector<64x1xf32>
      %cst_36 = arith.constant 2.560000e+02 : f32
      %39 = vector.broadcast %cst_36 : f32 to vector<64x1xf32>
      %40 = arith.divf %38, %39 : vector<64x1xf32>
      %c0_37 = arith.constant 0 : index
      %c0_38 = arith.constant 0 : index
      %c0_39 = arith.constant 0 : index
      %41 = vector.load %arg10[%c0_37, %c0_38, %c0_39] : memref<1x64x1xf32, #tpu.memory_space<vmem>>, vector<1x64x1xf32>
      %42 = vector.shape_cast %41 : vector<1x64x1xf32> to vector<64x1xf32>
      %43 = vector.shape_cast %40 : vector<64x1xf32> to vector<1x64x1xf32>
      tpu.vector_store %arg10[%c0_37, %c0_38, %c0_39], %43 {strides = array<i32>} : memref<1x64x1xf32, #tpu.memory_space<vmem>>, vector<1x64x1xf32>,
      %c0_40 = arith.constant 0 : index
      %c0_41 = arith.constant 0 : index
      %44 = vector.load %arg13[%c0_40, %c0_41] : memref<64x1xf32, #tpu.memory_space<vmem>>, vector<64x1xf32>
      %c0_42 = arith.constant 0 : index
      %c0_43 = arith.constant 0 : index
      %c0_44 = arith.constant 0 : index
      %45 = vector.load %arg11[%c0_42, %c0_43, %c0_44] : memref<1x64x1xf32, #tpu.memory_space<vmem>>, vector<1x64x1xf32>
      %46 = vector.shape_cast %45 : vector<1x64x1xf32> to vector<64x1xf32>
      %47 = vector.shape_cast %44 : vector<64x1xf32> to vector<1x64x1xf32>
      tpu.vector_store %arg11[%c0_42, %c0_43, %c0_44], %47 {strides = array<i32>} : memref<1x64x1xf32, #tpu.memory_space<vmem>>, vector<1x64x1xf32>,
    } else {
    }
    return
  }
  func.func @transform_0(%arg0: i32, %arg1: i32, %arg2: i32) -> (i32, i32) {
    %c0_i32 = arith.constant 0 : i32
    return %arg1, %arg0 : i32, i32
  }
  func.func @transform_1(%arg0: i32, %arg1: i32, %arg2: i32) -> (i32, i32, i32) {
    %c0_i32 = arith.constant 0 : i32
    %c0_i32_0 = arith.constant 0 : i32
    return %arg0, %c0_i32, %arg2 : i32, i32, i32
  }
  func.func @transform_2(%arg0: i32, %arg1: i32, %arg2: i32) -> (i32, i32, i32) {
    %c0_i32 = arith.constant 0 : i32
    %c0_i32_0 = arith.constant 0 : i32
    return %arg0, %arg2, %c0_i32 : i32, i32, i32
  }
  func.func @transform_3(%arg0: i32, %arg1: i32, %arg2: i32) -> (i32, i32, i32) {
    %c0_i32 = arith.constant 0 : i32
    %c0_i32_0 = arith.constant 0 : i32
    return %arg0, %c0_i32, %arg2 : i32, i32, i32
  }
  func.func @transform_4(%arg0: i32, %arg1: i32, %arg2: i32) -> (i32, i32, i32) {
    %c0_i32 = arith.constant 0 : i32
    %c0_i32_0 = arith.constant 0 : i32
    %c0_i32_1 = arith.constant 0 : i32
    return %arg0, %c0_i32, %c0_i32_0 : i32, i32, i32
  }
  func.func @transform_5(%arg0: i32, %arg1: i32, %arg2: i32) -> (i32, i32) {
    %c1_i32 = arith.constant 1 : i32
    %0 = arith.muli %arg0, %c1_i32 : i32
    %1 = arith.addi %0, %arg2 : i32
    %c0_i32 = arith.constant 0 : i32
    return %arg1, %1 : i32, i32
  }
  func.func @transform_6(%arg0: i32, %arg1: i32, %arg2: i32) -> (i32, i32) {
    %c0_i32 = arith.constant 0 : i32
    return %arg1, %arg0 : i32, i32
  }
  func.func @transform_7(%arg0: i32, %arg1: i32, %arg2: i32) -> (i32, i32, i32) {
    %c0_i32 = arith.constant 0 : i32
    %c0_i32_0 = arith.constant 0 : i32
    return %arg0, %arg1, %c0_i32 : i32, i32, i32
  }
  func.func @transform_8(%arg0: i32, %arg1: i32, %arg2: i32) -> (i32, i32, i32) {
    %c0_i32 = arith.constant 0 : i32
    %c0_i32_0 = arith.constant 0 : i32
    return %arg0, %arg1, %c0_i32 : i32, i32, i32
  }
}

</mosaic_0001>

<llo_original>
// kernel: sae_forward.1
$region0: #{sae_forward.1}
  #allocation0 [shape = 'u32[]', space=smem, size = 0x4, offset = 0x4, fixed_abs, tag = 'smem constant byte address 0x4 - core index']
  #allocation1 [shape = 'u32[144,128]{1,0:T(1,128)}', space=vmem, size = 0x12000, scoped, tag = 'internal scratch']
  #allocation2 [shape = 'f32[64,256]{1,0:T(8,128)}', space=vmem, size = 0x10000, scoped, tag = 'scratch operand']
  #allocation3 [shape = 'f32[64,1]{1,0:T(8,128)}', space=vmem, size = 0x8000, scoped, tag = 'scratch operand']
  #allocation4 [shape = 'f32[64,256]{1,0:T(8,128)}', space=vmem, size = 0x10000, scoped, tag = 'scratch operand']
  %s0 = inlined_call_operand.vmem [shape: f32[64,512], index: 0, kind: input, shape index: {}]
  %s1 = inlined_call_operand.hbm [shape: f32[2,256,512], index: 1, kind: input, shape index: {}]
  %s2 = inlined_call_operand.hbm [shape: f32[2,512,256], index: 2, kind: input, shape index: {}]
  %s3 = inlined_call_operand.vmem [shape: f32[2,1,512], index: 3, kind: input, shape index: {}]
  %s4 = inlined_call_operand.vmem [shape: f32[2,1,256], index: 4, kind: input, shape index: {}]
  %s5 = inlined_call_operand.vmem [shape: f32[64,1024], index: 5, kind: output, shape index: {0}]
  %s6 = inlined_call_operand.vmem [shape: f32[64,512], index: 6, kind: output, shape index: {1}]
  %s7 = inlined_call_operand.vmem [shape: f32[2,64,1], index: 7, kind: output, shape index: {2}]
  %s8 = inlined_call_operand.vmem [shape: f32[2,64,1], index: 8, kind: output, shape index: {3}]
  %9 = xla_tuple %s5, %s6, %s7, %s8
  %s10 = sld [smem:[#allocation0]]
  $region154: #{sae_forward.1} parent=0
    _
  %s12 = ssub.s32 1, %s10
  %s13 = scalar_select 0, %s12, %s10
  $region1: #{sae_forward.1} parent=0
    #allocation5 [shape = 'u8[131072]{0}', space=vmem, size = 0x20000, scoped, tag = 'input window, operand 0']
    #allocation6 [shape = 'u8[1048576]{0}', space=vmem, size = 0x100000, scoped, tag = 'input window, operand 1']
    #allocation7 [shape = 's32[2]{0}', space=sflag, size = 0x8, scoped, tag = 'scoped memory for sae_forward.1']
    #allocation8 [shape = 'u8[1048576]{0}', space=vmem, size = 0x100000, scoped, tag = 'input window, operand 2']
    #allocation9 [shape = 's32[2]{0}', space=sflag, size = 0x8, scoped, tag = 'scoped memory for sae_forward.1']
    #allocation10 [shape = 'u8[262144]{0}', space=vmem, size = 0x40000, scoped, tag = 'output window, operand 0']
    #allocation11 [shape = 'u8[131072]{0}', space=vmem, size = 0x20000, scoped, tag = 'output window, operand 1']
    %14 = vsyncpa [#allocation7], 0
    %s15 = scalar_lea.sflag [#allocation7], 1
    %16 = vsyncpa %s15, 0
    %17 = vsyncpa [#allocation9], 0
    %s18 = scalar_lea.sflag [#allocation9], 1
    %19 = vsyncpa %s18, 0
    loop: start=0, step=1, limit=4
    $region2: #{sae_forward.1} parent=1 // loop_pre_header
      _
    $region3: #{sae_forward.1} parent=1 // loop_header
      %s21 = sphi 0, %s25
      %p22 = scmp.ge.s32.totalorder %s21, 4
      %s28 = sphi 0, %s47
      %s29 = sphi 0, %s43
      %s30 = sphi 0, %s39
      %s31 = sphi 0, %s28
      %s32 = sphi 0, %s29
      %s33 = sphi 0, %s30
      %s34 = sphi 0, %s31
      %s35 = sphi 0, %s32
      %s36 = sphi 0, %s33
      %s52 = sphi 0, %s54
      %s55 = sphi 0, %s52
      %s56 = sphi 0, %s55
      %s72 = sphi 0, %s56
      %s80 = sphi 0, %s82
      %s83 = sphi 0, %s80
      %s84 = sphi 0, %s83
      %s100 = sphi 0, %s84
      %s108 = sphi 0, %s110
      %s111 = sphi 0, %s108
      %s112 = sphi 0, %s111
      %s128 = sphi 0, %s112
      %s136 = sphi 0, %s138
      %s139 = sphi 0, %s136
      %s140 = sphi 0, %s139
      %s156 = sphi 0, %s140
      %s162 = sphi 0, %s164
      %s165 = sphi 0, %s162
      %s166 = sphi 0, %s165
      %s182 = sphi 0, %s166
      %s192 = sphi 0, %s194
      %s195 = sphi 0, %s192
      %s196 = sphi 0, %s195
      %s212 = sphi 0, %s196
      %s220 = sphi 0, %s222
      %s223 = sphi 0, %s220
      %s224 = sphi 0, %s223
      %s240 = sphi 0, %s224
      %s248 = sphi 0, %s250
      %s251 = sphi 0, %s248
      %s252 = sphi 0, %s251
      %s268 = sphi 0, %s252
      %s276 = sphi 0, %s278
      %s279 = sphi 0, %s276
      %s280 = sphi 0, %s279
      %s296 = sphi 0, %s280
    $region4: #{sae_forward.1} parent=1 // loop_header_branch
      %24 = sbr.rel (%p22) target = $region8
    $region5: #{sae_forward.1} parent=1 // loop_body
      %s26 = ssub.s32 %s21, 1
      %s27 = ssub.s32 %s21, 2
      %s37 = sadd.s32 1, %s30
      %p38 = scmp.ge.s32.totalorder %s37, 1
      %s39 = scalar_select %p38, 0, %s37
      %s40 = sadd.s32 1, %s29
      %s41 = scalar_select %p38, %s40, %s29
      %p42 = scmp.ge.s32.totalorder %s41, 1
      %s43 = scalar_select %p42, 0, %s41
      %s44 = sadd.s32 1, %s28
      %s45 = scalar_select %p42, %s44, %s28
      %p46 = scmp.ge.s32.totalorder %s45, 2
      %s47 = scalar_select %p46, 0, %s45
      %s48 = ssub.s32 %s29, %s43
      %s49 = ssub.s32 %s28, %s47
      %s50 = sor.u32 %s48, %s49
      %p51 = scmp.eq.s32.totalorder %s50, 0
      %s53 = sadd.s32 %s52, 1
      %s54 = scalar_select %p51, %s52, %s53
      %p57 = pneg %p51
      %p58 = scmp.eq.s32.totalorder %s21, 1
      %p59 = por %p57, %p58
      %p60 = scmp.ne.s32.totalorder %s52, %s55
      %p61 = scmp.eq.s32.totalorder %s21, 0
      %p62 = por %p60, %p61
      %p63 = scmp.ne.s32.totalorder %s52, %s55
      %p64 = scmp.eq.s32.totalorder %s26, 1
      %p65 = por %p63, %p64
      %p66 = scmp.ne.s32.totalorder %s55, %s56
      %p67 = scmp.eq.s32.totalorder %s26, 0
      %p68 = por %p66, %p67
      %p69 = scmp.ne.s32.totalorder %s55, %s56
      %p70 = scmp.eq.s32.totalorder %s27, 1
      %p71 = por %p69, %p70
      %p73 = scmp.ne.s32.totalorder %s56, %s72
      %p74 = scmp.eq.s32.totalorder %s27, 0
      %p75 = por %p73, %p74
      %s76 = ssub.s32 %s28, %s47
      %s77 = ssub.s32 %s30, %s39
      %s78 = sor.u32 %s76, %s77
      %p79 = scmp.eq.s32.totalorder %s78, 0
      %s81 = sadd.s32 %s80, 1
      %s82 = scalar_select %p79, %s80, %s81
      %p85 = pneg %p79
      %p86 = scmp.eq.s32.totalorder %s21, 1
      %p87 = por %p85, %p86
      %p88 = scmp.ne.s32.totalorder %s80, %s83
      %p89 = scmp.eq.s32.totalorder %s21, 0
      %p90 = por %p88, %p89
      %p91 = scmp.ne.s32.totalorder %s80, %s83
      %p92 = scmp.eq.s32.totalorder %s26, 1
      %p93 = por %p91, %p92
      %p94 = scmp.ne.s32.totalorder %s83, %s84
      %p95 = scmp.eq.s32.totalorder %s26, 0
      %p96 = por %p94, %p95
      %p97 = scmp.ne.s32.totalorder %s83, %s84
      %p98 = scmp.eq.s32.totalorder %s27, 1
      %p99 = por %p97, %p98
      %p101 = scmp.ne.s32.totalorder %s84, %s100
      %p102 = scmp.eq.s32.totalorder %s27, 0
      %p103 = por %p101, %p102
      %s104 = ssub.s32 %s28, %s47
      %s105 = ssub.s32 %s30, %s39
      %s106 = sor.u32 %s104, %s105
      %p107 = scmp.eq.s32.totalorder %s106, 0
      %s109 = sadd.s32 %s108, 1
      %s110 = scalar_select %p107, %s108, %s109
      %p113 = pneg %p107
      %p114 = scmp.eq.s32.totalorder %s21, 1
      %p115 = por %p113, %p114
      %p116 = scmp.ne.s32.totalorder %s108, %s111
      %p117 = scmp.eq.s32.totalorder %s21, 0
      %p118 = por %p116, %p117
      %p119 = scmp.ne.s32.totalorder %s108, %s111
      %p120 = scmp.eq.s32.totalorder %s26, 1
      %p121 = por %p119, %p120
      %p122 = scmp.ne.s32.totalorder %s111, %s112
      %p123 = scmp.eq.s32.totalorder %s26, 0
      %p124 = por %p122, %p123
      %p125 = scmp.ne.s32.totalorder %s111, %s112
      %p126 = scmp.eq.s32.totalorder %s27, 1
      %p127 = por %p125, %p126
      %p129 = scmp.ne.s32.totalorder %s112, %s128
      %p130 = scmp.eq.s32.totalorder %s27, 0
      %p131 = por %p129, %p130
      %s132 = ssub.s32 %s28, %s47
      %s133 = ssub.s32 %s30, %s39
      %s134 = sor.u32 %s132, %s133
      %p135 = scmp.eq.s32.totalorder %s134, 0
      %s137 = sadd.s32 %s136, 1
      %s138 = scalar_select %p135, %s136, %s137
      %p141 = pneg %p135
      %p142 = scmp.eq.s32.totalorder %s21, 1
      %p143 = por %p141, %p142
      %p144 = scmp.ne.s32.totalorder %s136, %s139
      %p145 = scmp.eq.s32.totalorder %s21, 0
      %p146 = por %p144, %p145
      %p147 = scmp.ne.s32.totalorder %s136, %s139
      %p148 = scmp.eq.s32.totalorder %s26, 1
      %p149 = por %p147, %p148
      %p150 = scmp.ne.s32.totalorder %s139, %s140
      %p151 = scmp.eq.s32.totalorder %s26, 0
      %p152 = por %p150, %p151
      %p153 = scmp.ne.s32.totalorder %s139, %s140
      %p154 = scmp.eq.s32.totalorder %s27, 1
      %p155 = por %p153, %p154
      %p157 = scmp.ne.s32.totalorder %s140, %s156
      %p158 = scmp.eq.s32.totalorder %s27, 0
      %p159 = por %p157, %p158
      %s160 = ssub.s32 %s28, %s47
      %p161 = scmp.eq.s32.totalorder %s160, 0
      %s163 = sadd.s32 %s162, 1
      %s164 = scalar_select %p161, %s162, %s163
      %p167 = pneg %p161
      %p168 = scmp.eq.s32.totalorder %s21, 1
      %p169 = por %p167, %p168
      %p170 = scmp.ne.s32.totalorder %s162, %s165
      %p171 = scmp.eq.s32.totalorder %s21, 0
      %p172 = por %p170, %p171
      %p173 = scmp.ne.s32.totalorder %s162, %s165
      %p174 = scmp.eq.s32.totalorder %s26, 1
      %p175 = por %p173, %p174
      %p176 = scmp.ne.s32.totalorder %s165, %s166
      %p177 = scmp.eq.s32.totalorder %s26, 0
      %p178 = por %p176, %p177
      %p179 = scmp.ne.s32.totalorder %s165, %s166
      %p180 = scmp.eq.s32.totalorder %s27, 1
      %p181 = por %p179, %p180
      %p183 = scmp.ne.s32.totalorder %s166, %s182
      %p184 = scmp.eq.s32.totalorder %s27, 0
      %p185 = por %p183, %p184
      %s186 = sadd.s32 %s28, %s30
      %s187 = sadd.s32 %s47, %s39
      %s188 = ssub.s32 %s29, %s43
      %s189 = ssub.s32 %s186, %s187
      %s190 = sor.u32 %s188, %s189
      %p191 = scmp.eq.s32.totalorder %s190, 0
      %s193 = sadd.s32 %s192, 1
      %s194 = scalar_select %p191, %s192, %s193
      %p197 = pneg %p191
      %p198 = scmp.eq.s32.totalorder %s21, 1
      %p199 = por %p197, %p198
      %p200 = scmp.ne.s32.totalorder %s192, %s195
      %p201 = scmp.eq.s32.totalorder %s21, 0
      %p202 = por %p200, %p201
      %p203 = scmp.ne.s32.totalorder %s192, %s195
      %p204 = scmp.eq.s32.totalorder %s26, 1
      %p205 = por %p203, %p204
      %p206 = scmp.ne.s32.totalorder %s195, %s196
      %p207 = scmp.eq.s32.totalorder %s26, 0
      %p208 = por %p206, %p207
      %p209 = scmp.ne.s32.totalorder %s195, %s196
      %p210 = scmp.eq.s32.totalorder %s27, 1
      %p211 = por %p209, %p210
      %p213 = scmp.ne.s32.totalorder %s196, %s212
      %p214 = scmp.eq.s32.totalorder %s27, 0
      %p215 = por %p213, %p214
      %s216 = ssub.s32 %s29, %s43
      %s217 = ssub.s32 %s28, %s47
      %s218 = sor.u32 %s216, %s217
      %p219 = scmp.eq.s32.totalorder %s218, 0
      %s221 = sadd.s32 %s220, 1
      %s222 = scalar_select %p219, %s220, %s221
      %p225 = pneg %p219
      %p226 = scmp.eq.s32.totalorder %s21, 1
      %p227 = por %p225, %p226
      %p228 = scmp.ne.s32.totalorder %s220, %s223
      %p229 = scmp.eq.s32.totalorder %s21, 0
      %p230 = por %p228, %p229
      %p231 = scmp.ne.s32.totalorder %s220, %s223
      %p232 = scmp.eq.s32.totalorder %s26, 1
      %p233 = por %p231, %p232
      %p234 = scmp.ne.s32.totalorder %s223, %s224
      %p235 = scmp.eq.s32.totalorder %s26, 0
      %p236 = por %p234, %p235
      %p237 = scmp.ne.s32.totalorder %s223, %s224
      %p238 = scmp.eq.s32.totalorder %s27, 1
      %p239 = por %p237, %p238
      %p241 = scmp.ne.s32.totalorder %s224, %s240
      %p242 = scmp.eq.s32.totalorder %s27, 0
      %p243 = por %p241, %p242
      %s244 = ssub.s32 %s28, %s47
      %s245 = ssub.s32 %s29, %s43
      %s246 = sor.u32 %s244, %s245
      %p247 = scmp.eq.s32.totalorder %s246, 0
      %s249 = sadd.s32 %s248, 1
      %s250 = scalar_select %p247, %s248, %s249
      %p253 = pneg %p247
      %p254 = scmp.eq.s32.totalorder %s21, 1
      %p255 = por %p253, %p254
      %p256 = scmp.ne.s32.totalorder %s248, %s251
      %p257 = scmp.eq.s32.totalorder %s21, 0
      %p258 = por %p256, %p257
      %p259 = scmp.ne.s32.totalorder %s248, %s251
      %p260 = scmp.eq.s32.totalorder %s26, 1
      %p261 = por %p259, %p260
      %p262 = scmp.ne.s32.totalorder %s251, %s252
      %p263 = scmp.eq.s32.totalorder %s26, 0
      %p264 = por %p262, %p263
      %p265 = scmp.ne.s32.totalorder %s251, %s252
      %p266 = scmp.eq.s32.totalorder %s27, 1
      %p267 = por %p265, %p266
      %p269 = scmp.ne.s32.totalorder %s252, %s268
      %p270 = scmp.eq.s32.totalorder %s27, 0
      %p271 = por %p269, %p270
      %s272 = ssub.s32 %s28, %s47
      %s273 = ssub.s32 %s29, %s43
      %s274 = sor.u32 %s272, %s273
      %p275 = scmp.eq.s32.totalorder %s274, 0
      %s277 = sadd.s32 %s276, 1
      %s278 = scalar_select %p275, %s276, %s277
      %p281 = pneg %p275
      %p282 = scmp.eq.s32.totalorder %s21, 1
      %p283 = por %p281, %p282
      %p284 = scmp.ne.s32.totalorder %s276, %s279
      %p285 = scmp.eq.s32.totalorder %s21, 0
      %p286 = por %p284, %p285
      %p287 = scmp.ne.s32.totalorder %s276, %s279
      %p288 = scmp.eq.s32.totalorder %s26, 1
      %p289 = por %p287, %p288
      %p290 = scmp.ne.s32.totalorder %s279, %s280
      %p291 = scmp.eq.s32.totalorder %s26, 0
      %p292 = por %p290, %p291
      %p293 = scmp.ne.s32.totalorder %s279, %s280
      %p294 = scmp.eq.s32.totalorder %s27, 1
      %p295 = por %p293, %p294
      %p297 = scmp.ne.s32.totalorder %s280, %s296
      %p298 = scmp.eq.s32.totalorder %s27, 0
      %p299 = por %p297, %p298
      %p300 = scmp.le.s32.totalorder 1, %s21
      %p301 = scmp.lt.s32.totalorder %s21, 3
      %p302 = pnand %p300, %p301
      %p303 = pneg %p302
      // Predicated region
      $region9: #{sae_forward.1} parent=5 // pred_check
        _
      $region10: #{sae_forward.1} parent=5 // pred_check_branch
        %305 = sbr.rel (%p302) target = $region12
      $region11: #{sae_forward.1} parent=5 // pred_region
        %s306 = ssub.s32 %s21, 1
      $region12: #{sae_forward.1} parent=5 // pred_fallthru
        _
      %p307 = scmp.lt.s32.totalorder %s21, 2
      // Predicated region
      $region13: #{sae_forward.1} parent=5 // pred_check
        %p308 = pneg %p307
      $region14: #{sae_forward.1} parent=5 // pred_check_branch
        %310 = sbr.rel (%p308) target = $region16
      $region15: #{sae_forward.1} parent=5 // pred_region
        // Predicated region
        $region17: #{sae_forward.1} parent=15 // pred_check
          %p311 = pneg %p62
        $region18: #{sae_forward.1} parent=15 // pred_check_branch
          %313 = sbr.rel (%p311) target = $region20
        $region19: #{sae_forward.1} parent=15 // pred_region
          %s314 = sand.u32 %s52, 1
          %s315 = sand.u32 %s52, 1
          %s316 = smul.addr %s315, 128
          %s317 = scalar_lea.vmem [#allocation5], %s316
          %s318 = smul.u32 8, %s29
          %s319 = smul.u32 2, %s28
          %s320 = smul.addr %s318, 4
          %s321 = sadd.s32 %s319, %s320
          %s322 = smul.addr %s321, 8
          %s323 = scalar_lea.vmem %s0, %s322
          // Predicated region
          $region21: #{sae_forward.1} parent=19 // pred_check
            _
          $region22: #{sae_forward.1} parent=19 // pred_check_branch
            %325 = sbr.rel (0) target = $region24
          $region23: #{sae_forward.1} parent=19 // pred_region
            // Predicated region
            $region25: #{sae_forward.1} parent=23 // pred_check
              _
            $region26: #{sae_forward.1} parent=23 // pred_check_branch
              %327 = sbr.rel (0) target = $region28
            $region27: #{sae_forward.1} parent=23 // pred_region
              loop: start=0, step=1, limit=1
              $region29: #{sae_forward.1} parent=27 // loop_pre_header
                _
              $region30: #{sae_forward.1} parent=27 // loop_header
                %s329 = sphi 0, %s333
                %p330 = scmp.ge.s32.totalorder %s329, 1
                %s334 = sphi %s323, %s323
                %s335 = sphi %s317, %s317
              $region31: #{sae_forward.1} parent=27 // loop_header_branch
                %332 = sbr.rel (%p330) target = $region35
              $region32: #{sae_forward.1} parent=27 // loop_body
                %v336 = vld [vmem:[%s334] sm:$0xff]
                %337 = vst [vmem:[%s335] sm:$0xff] %v336
                %v338 = vld [vmem:[%s334 + $0x8] sm:$0xff]
                %339 = vst [vmem:[%s335 + $0x8] sm:$0xff] %v338
                %v340 = vld [vmem:[%s334 + $0x20] sm:$0xff]
                %341 = vst [vmem:[%s335 + $0x10] sm:$0xff] %v340
                %v342 = vld [vmem:[%s334 + $0x28] sm:$0xff]
                %343 = vst [vmem:[%s335 + $0x18] sm:$0xff] %v342
                %v344 = vld [vmem:[%s334 + $0x40] sm:$0xff]
                %345 = vst [vmem:[%s335 + $0x20] sm:$0xff] %v344
                %v346 = vld [vmem:[%s334 + $0x48] sm:$0xff]
                %347 = vst [vmem:[%s335 + $0x28] sm:$0xff] %v346
                %v348 = vld [vmem:[%s334 + $0x60] sm:$0xff]
                %349 = vst [vmem:[%s335 + $0x30] sm:$0xff] %v348
                %v350 = vld [vmem:[%s334 + $0x68] sm:$0xff]
                %351 = vst [vmem:[%s335 + $0x38] sm:$0xff] %v350
                %v352 = vld [vmem:[%s334 + $0x80] sm:$0xff]
                %353 = vst [vmem:[%s335 + $0x40] sm:$0xff] %v352
                %v354 = vld [vmem:[%s334 + $0x88] sm:$0xff]
                %355 = vst [vmem:[%s335 + $0x48] sm:$0xff] %v354
                %v356 = vld [vmem:[%s334 + $0xa0] sm:$0xff]
                %357 = vst [vmem:[%s335 + $0x50] sm:$0xff] %v356
                %v358 = vld [vmem:[%s334 + $0xa8] sm:$0xff]
                %359 = vst [vmem:[%s335 + $0x58] sm:$0xff] %v358
                %v360 = vld [vmem:[%s334 + $0xc0] sm:$0xff]
                %361 = vst [vmem:[%s335 + $0x60] sm:$0xff] %v360
                %v362 = vld [vmem:[%s334 + $0xc8] sm:$0xff]
                %363 = vst [vmem:[%s335 + $0x68] sm:$0xff] %v362
                %v364 = vld [vmem:[%s334 + $0xe0] sm:$0xff]
                %365 = vst [vmem:[%s335 + $0x70] sm:$0xff] %v364
                %v366 = vld [vmem:[%s334 + $0xe8] sm:$0xff]
                %367 = vst [vmem:[%s335 + $0x78] sm:$0xff] %v366
              $region33: #{sae_forward.1} parent=27 // loop_footer
                %s333 = sadd.s32 1, %s329
              $region34: #{sae_forward.1} parent=27 // loop_footer_branch
                %328 = sbr.rel target = $region30
              $region35: #{sae_forward.1} parent=27 // loop_exit
                _
            $region28: #{sae_forward.1} parent=23 // pred_fallthru
              _
            // Predicated region
            $region36: #{sae_forward.1} parent=23 // pred_check
              _
            $region37: #{sae_forward.1} parent=23 // pred_check_branch
              %369 = sbr.rel target = $region39
            $region38: #{sae_forward.1} parent=23 // pred_region
              _
            $region39: #{sae_forward.1} parent=23 // pred_fallthru
              _
          $region24: #{sae_forward.1} parent=19 // pred_fallthru
            _
          %370 = vnop
        $region20: #{sae_forward.1} parent=15 // pred_fallthru
          _
        // Predicated region
        $region40: #{sae_forward.1} parent=15 // pred_check
          %p371 = pneg %p90
        $region41: #{sae_forward.1} parent=15 // pred_check_branch
          %373 = sbr.rel (%p371) target = $region43
        $region42: #{sae_forward.1} parent=15 // pred_region
          %s374 = sand.u32 %s80, 1
          %s375 = scalar_lea.sflag [#allocation7], %s374
          %s376 = sand.u32 %s80, 1
          %s377 = smul.addr %s376, 1024
          %s378 = scalar_lea.vmem [#allocation6], %s377
          %s379 = smul.u32 4, %s30
          %s381 = ssub.s32 16384, 16384
          %382 = vsyncadd %s375, %s381
          %s383 = smul.addr %s28, 128
          %s384 = sadd.s32 %s379, %s383
          %s385 = smul.addr %s384, 128
          %s386 = scalar_lea.hbm %s1, %s385
          %s387 = sshll.u32 %s378, 4
          %s388 = int_to_ptr.vmem [resolvable:$true] %s387
          %393 = dma.hbm_to_vmem [thread:$0]  %s386, 16384, %s388, %s375, 512, 512, 32
        $region43: #{sae_forward.1} parent=15 // pred_fallthru
          _
        // Predicated region
        $region44: #{sae_forward.1} parent=15 // pred_check
          %p394 = pneg %p118
        $region45: #{sae_forward.1} parent=15 // pred_check_branch
          %396 = sbr.rel (%p394) target = $region47
        $region46: #{sae_forward.1} parent=15 // pred_region
          %s397 = sand.u32 %s108, 1
          %s398 = scalar_lea.sflag [#allocation9], %s397
          %s399 = sand.u32 %s108, 1
          %s400 = smul.addr %s399, 1024
          %s401 = scalar_lea.vmem [#allocation8], %s400
          %s402 = smul.u32 64, %s30
          %s404 = ssub.s32 16384, 16384
          %405 = vsyncadd %s398, %s404
          %s406 = smul.addr %s402, 2
          %s407 = smul.addr %s28, 128
          %s408 = sadd.s32 %s406, %s407
          %s409 = smul.addr %s408, 128
          %s410 = scalar_lea.hbm %s2, %s409
          %s411 = sshll.u32 %s401, 4
          %s412 = int_to_ptr.vmem [resolvable:$true] %s411
          %417 = dma.hbm_to_vmem [thread:$0]  %s410, 16384, %s412, %s398, 256, 256, 16
        $region47: #{sae_forward.1} parent=15 // pred_fallthru
          _
        // Predicated region
        $region48: #{sae_forward.1} parent=15 // pred_check
          %p418 = pneg %p146
        $region49: #{sae_forward.1} parent=15 // pred_check_branch
          %420 = sbr.rel (%p418) target = $region51
        $region50: #{sae_forward.1} parent=15 // pred_region
          %s421 = smul.u32 4, %s30
          %p422 = scmp.lt.s32.totalorder %s28, 1
          %s423 = scalar_select %p422, %s28, 1
          %p424 = scmp.lt.s32.totalorder %s421, 3
          %s425 = scalar_select %p424, %s421, 3
          %s426 = smul.addr %s423, 4
          %s427 = sadd.s32 %s425, %s426
          %s428 = scalar_lea.vmem %s3, %s427
          %s429 = smul.u32 4, %s30
        $region51: #{sae_forward.1} parent=15 // pred_fallthru
          _
        // Predicated region
        $region52: #{sae_forward.1} parent=15 // pred_check
          %p430 = pneg %p172
        $region53: #{sae_forward.1} parent=15 // pred_check_branch
          %432 = sbr.rel (%p430) target = $region55
        $region54: #{sae_forward.1} parent=15 // pred_region
          %p433 = scmp.lt.s32.totalorder %s28, 1
          %s434 = scalar_select %p433, %s28, 1
          %s435 = smul.addr %s434, 2
          %s436 = scalar_lea.vmem %s4, %s435
        $region55: #{sae_forward.1} parent=15 // pred_fallthru
          _
      $region16: #{sae_forward.1} parent=5 // pred_fallthru
        _
      %p437 = scmp.le.s32.totalorder 1, %s21
      %p438 = scmp.lt.s32.totalorder %s21, 3
      %p439 = pnand %p437, %p438
      %p440 = pneg %p439
      // Predicated region
      $region56: #{sae_forward.1} parent=5 // pred_check
        _
      $region57: #{sae_forward.1} parent=5 // pred_check_branch
        %442 = sbr.rel (%p439) target = $region59
      $region58: #{sae_forward.1} parent=5 // pred_region
        %s443 = ssub.s32 %s21, 1
        %s444 = sand.u32 %s55, 1
        %s445 = sand.u32 %s55, 1
        %s446 = smul.addr %s445, 128
        %s447 = scalar_lea.vmem [#allocation5], %s446
        // Predicated region
        $region60: #{sae_forward.1} parent=58 // pred_check
          %p448 = pneg %p68
        $region61: #{sae_forward.1} parent=58 // pred_check_branch
          %450 = sbr.rel (%p448) target = $region63
        $region62: #{sae_forward.1} parent=58 // pred_region
          _
        $region63: #{sae_forward.1} parent=58 // pred_fallthru
          _
        %s451 = sand.u32 %s83, 1
        %s452 = scalar_lea.sflag [#allocation7], %s451
        %s453 = sand.u32 %s83, 1
        %s454 = smul.addr %s453, 1024
        %s455 = scalar_lea.vmem [#allocation6], %s454
        // Predicated region
        $region64: #{sae_forward.1} parent=58 // pred_check
          %p456 = pneg %p96
        $region65: #{sae_forward.1} parent=58 // pred_check_branch
          %458 = sbr.rel (%p456) target = $region67
        $region66: #{sae_forward.1} parent=58 // pred_region
          %459 = dma.done %s452, 16384
        $region67: #{sae_forward.1} parent=58 // pred_fallthru
          _
        %s460 = sand.u32 %s111, 1
        %s461 = scalar_lea.sflag [#allocation9], %s460
        %s462 = sand.u32 %s111, 1
        %s463 = smul.addr %s462, 1024
        %s464 = scalar_lea.vmem [#allocation8], %s463
        // Predicated region
        $region68: #{sae_forward.1} parent=58 // pred_check
          %p465 = pneg %p124
        $region69: #{sae_forward.1} parent=58 // pred_check_branch
          %467 = sbr.rel (%p465) target = $region71
        $region70: #{sae_forward.1} parent=58 // pred_region
          %468 = dma.done %s461, 16384
        $region71: #{sae_forward.1} parent=58 // pred_fallthru
          _
        %s469 = sand.u32 %s55, 1
        %s470 = sand.u32 %s55, 1
        %s471 = smul.addr %s470, 128
        %s472 = scalar_lea.vmem [#allocation5], %s471
        %p473 = pneg %p68
        %p474 = pneg %p65
        %s475 = sand.u32 %s83, 1
        %s476 = scalar_lea.sflag [#allocation7], %s475
        %s477 = sand.u32 %s83, 1
        %s478 = smul.addr %s477, 1024
        %s479 = scalar_lea.vmem [#allocation6], %s478
        %p480 = pneg %p96
        %p481 = pneg %p93
        %s482 = sand.u32 %s111, 1
        %s483 = scalar_lea.sflag [#allocation9], %s482
        %s484 = sand.u32 %s111, 1
        %s485 = smul.addr %s484, 1024
        %s486 = scalar_lea.vmem [#allocation8], %s485
        %p487 = pneg %p124
        %p488 = pneg %p121
        %s489 = smul.u32 4, %s33
        %p490 = scmp.lt.s32.totalorder %s31, 1
        %s491 = scalar_select %p490, %s31, 1
        %p492 = scmp.lt.s32.totalorder %s489, 3
        %s493 = scalar_select %p492, %s489, 3
        %s494 = smul.addr %s491, 4
        %s495 = sadd.s32 %s493, %s494
        %s496 = scalar_lea.vmem %s3, %s495
        %p497 = pneg %p152
        %p498 = pneg %p149
        %p499 = scmp.lt.s32.totalorder %s31, 1
        %s500 = scalar_select %p499, %s31, 1
        %s501 = smul.addr %s500, 2
        %s502 = scalar_lea.vmem %s4, %s501
        %p503 = pneg %p178
        %p504 = pneg %p175
        %p505 = pneg %p208
        %p506 = pneg %p205
        %s507 = sand.u32 %s195, 1
        %s508 = sand.u32 %s195, 1
        %s509 = smul.addr %s508, 256
        %s510 = scalar_lea.vmem [#allocation10], %s509
        %p511 = pneg %p236
        %p512 = pneg %p233
        %s513 = sand.u32 %s223, 1
        %s514 = sand.u32 %s223, 1
        %s515 = smul.addr %s514, 128
        %s516 = scalar_lea.vmem [#allocation11], %s515
        %p517 = pneg %p264
        %p518 = pneg %p261
        %s519 = smul.u32 8, %s32
        %p520 = scmp.lt.s32.totalorder %s31, 1
        %s521 = scalar_select %p520, %s31, 1
        %p522 = scmp.lt.s32.totalorder %s519, 7
        %s523 = scalar_select %p522, %s519, 7
        %s524 = smul.addr %s521, 8
        %s525 = sadd.s32 %s523, %s524
        %s526 = smul.addr %s525, 8
        %s527 = scalar_lea.vmem %s7, %s526
        %p528 = pneg %p292
        %p529 = pneg %p289
        %s530 = smul.u32 8, %s32
        %p531 = scmp.lt.s32.totalorder %s31, 1
        %s532 = scalar_select %p531, %s31, 1
        %p533 = scmp.lt.s32.totalorder %s530, 7
        %s534 = scalar_select %p533, %s530, 7
        %s535 = smul.addr %s532, 8
        %s536 = sadd.s32 %s534, %s535
        %s537 = smul.addr %s536, 8
        %s538 = scalar_lea.vmem %s8, %s537
        %s539 = smul.u32 8, %s32
        %s540 = smul.u32 2, %s31
        %s541 = smul.u32 4, %s33
        %s542 = smul.u32 64, %s33
        %s543 = smul.u32 4, %s33
        %p544 = scmp.lt.s32.totalorder %s31, 1
        %s545 = scalar_select %p544, %s31, 1
        %p546 = scmp.lt.s32.totalorder %s543, 3
        %s547 = scalar_select %p546, %s543, 3
        %s548 = smul.addr %s545, 4
        %s549 = sadd.s32 %s547, %s548
        %s550 = scalar_lea.vmem %s3, %s549
        %s551 = smul.u32 4, %s33
        %p552 = scmp.lt.s32.totalorder %s31, 1
        %s553 = scalar_select %p552, %s31, 1
        %s554 = smul.addr %s553, 2
        %s555 = scalar_lea.vmem %s4, %s554
        %s556 = sadd.s32 %s31, %s33
        %s557 = smul.u32 8, %s32
        %s558 = smul.u32 4, %s556
        %s559 = smul.u32 8, %s32
        %s560 = smul.u32 2, %s31
        %s561 = smul.u32 8, %s32
        %p562 = scmp.lt.s32.totalorder %s31, 1
        %s563 = scalar_select %p562, %s31, 1
        %p564 = scmp.lt.s32.totalorder %s561, 7
        %s565 = scalar_select %p564, %s561, 7
        %s566 = smul.addr %s563, 8
        %s567 = sadd.s32 %s565, %s566
        %s568 = smul.addr %s567, 8
        %s569 = scalar_lea.vmem %s7, %s568
        %s570 = smul.u32 8, %s32
        %s571 = smul.u32 8, %s32
        %p572 = scmp.lt.s32.totalorder %s31, 1
        %s573 = scalar_select %p572, %s31, 1
        %p574 = scmp.lt.s32.totalorder %s571, 7
        %s575 = scalar_select %p574, %s571, 7
        %s576 = smul.addr %s573, 8
        %s577 = sadd.s32 %s575, %s576
        %s578 = smul.addr %s577, 8
        %s579 = scalar_lea.vmem %s8, %s578
        %s580 = smul.u32 8, %s32
        %p581 = scmp.eq.s32.totalorder %s33, 0
        // Predicated region
        $region72: #{sae_forward.1} parent=58 // pred_check
          %p582 = pneg %p581
        $region73: #{sae_forward.1} parent=58 // pred_check_branch
          %584 = sbr.rel (%p582) target = $region75
        $region74: #{sae_forward.1} parent=58 // pred_region
          %585 = vst [vmem:[#allocation2] sm:$0xff] 0.0
          %586 = vst [vmem:[#allocation2 + $0x8] sm:$0xff] 0.0
          %587 = vst [vmem:[#allocation2 + $0x10] sm:$0xff] 0.0
          %588 = vst [vmem:[#allocation2 + $0x18] sm:$0xff] 0.0
          %589 = vst [vmem:[#allocation2 + $0x20] sm:$0xff] 0.0
          %590 = vst [vmem:[#allocation2 + $0x28] sm:$0xff] 0.0
          %591 = vst [vmem:[#allocation2 + $0x30] sm:$0xff] 0.0
          %592 = vst [vmem:[#allocation2 + $0x38] sm:$0xff] 0.0
          %593 = vst [vmem:[#allocation2 + $0x40] sm:$0xff] 0.0
          %594 = vst [vmem:[#allocation2 + $0x48] sm:$0xff] 0.0
          %595 = vst [vmem:[#allocation2 + $0x50] sm:$0xff] 0.0
          %596 = vst [vmem:[#allocation2 + $0x58] sm:$0xff] 0.0
          %597 = vst [vmem:[#allocation2 + $0x60] sm:$0xff] 0.0
          %598 = vst [vmem:[#allocation2 + $0x68] sm:$0xff] 0.0
          %599 = vst [vmem:[#allocation2 + $0x70] sm:$0xff] 0.0
          %600 = vst [vmem:[#allocation2 + $0x78] sm:$0xff] 0.0
          %vm601 = vcmask 7168
          %602 = vst.msk [vmem:[#allocation3] sm:$0xff] %vm601, 0.0
          %603 = vst.msk [vmem:[#allocation3 + $0x8] sm:$0xff] %vm601, 0.0
          %604 = vst.msk [vmem:[#allocation3 + $0x10] sm:$0xff] %vm601, 0.0
          %605 = vst.msk [vmem:[#allocation3 + $0x18] sm:$0xff] %vm601, 0.0
          %606 = vst.msk [vmem:[#allocation3 + $0x20] sm:$0xff] %vm601, 0.0
          %607 = vst.msk [vmem:[#allocation3 + $0x28] sm:$0xff] %vm601, 0.0
          %608 = vst.msk [vmem:[#allocation3 + $0x30] sm:$0xff] %vm601, 0.0
          %609 = vst.msk [vmem:[#allocation3 + $0x38] sm:$0xff] %vm601, 0.0
          %v610 = vld [vmem:[%s447] sm:$0xff]
          %v611 = vld [vmem:[%s447 + $0x8] sm:$0xff]
          %v612 = vld [vmem:[%s447 + $0x10] sm:$0xff]
          %v613 = vld [vmem:[%s447 + $0x18] sm:$0xff]
          %v614 = vld [vmem:[%s447 + $0x20] sm:$0xff]
          %v615 = vld [vmem:[%s447 + $0x28] sm:$0xff]
          %v616 = vld [vmem:[%s447 + $0x30] sm:$0xff]
          %v617 = vld [vmem:[%s447 + $0x38] sm:$0xff]
          %v618 = vld [vmem:[%s447 + $0x40] sm:$0xff]
          %v619 = vld [vmem:[%s447 + $0x48] sm:$0xff]
          %v620 = vld [vmem:[%s447 + $0x50] sm:$0xff]
          %v621 = vld [vmem:[%s447 + $0x58] sm:$0xff]
          %v622 = vld [vmem:[%s447 + $0x60] sm:$0xff]
          %v623 = vld [vmem:[%s447 + $0x68] sm:$0xff]
          %v624 = vld [vmem:[%s447 + $0x70] sm:$0xff]
          %v625 = vld [vmem:[%s447 + $0x78] sm:$0xff]
          %v626 = vld [vmem:[%s555] sm:$0x3]
          %v628 = vlaneseq
          %v629 = vshrl.u32 %v628, 7
          %v630 = vsub.s32 0, %v629
          %v631 = vrot.slane %v626, %v630
          %v632 = vlaneseq
          %v633 = vshrl.u32 %v632, 7
          %v634 = vsub.s32 1, %v633
          %v635 = vrot.slane %v626, %v634
          %v638 = vsub.f32 %v610, %v631
          %v639 = vsub.f32 %v611, %v635
          %v640 = vsub.f32 %v612, %v631
          %v641 = vsub.f32 %v613, %v635
          %v642 = vsub.f32 %v614, %v631
          %v643 = vsub.f32 %v615, %v635
          %v644 = vsub.f32 %v616, %v631
          %v645 = vsub.f32 %v617, %v635
          %v646 = vsub.f32 %v618, %v631
          %v647 = vsub.f32 %v619, %v635
          %v648 = vsub.f32 %v620, %v631
          %v649 = vsub.f32 %v621, %v635
          %v650 = vsub.f32 %v622, %v631
          %v651 = vsub.f32 %v623, %v635
          %v652 = vsub.f32 %v624, %v631
          %v653 = vsub.f32 %v625, %v635
          %654 = vst [vmem:[#allocation4] sm:$0xff] %v638
          %655 = vst [vmem:[#allocation4 + $0x8] sm:$0xff] %v639
          %656 = vst [vmem:[#allocation4 + $0x10] sm:$0xff] %v640
          %657 = vst [vmem:[#allocation4 + $0x18] sm:$0xff] %v641
          %658 = vst [vmem:[#allocation4 + $0x20] sm:$0xff] %v642
          %659 = vst [vmem:[#allocation4 + $0x28] sm:$0xff] %v643
          %660 = vst [vmem:[#allocation4 + $0x30] sm:$0xff] %v644
          %661 = vst [vmem:[#allocation4 + $0x38] sm:$0xff] %v645
          %662 = vst [vmem:[#allocation4 + $0x40] sm:$0xff] %v646
          %663 = vst [vmem:[#allocation4 + $0x48] sm:$0xff] %v647
          %664 = vst [vmem:[#allocation4 + $0x50] sm:$0xff] %v648
          %665 = vst [vmem:[#allocation4 + $0x58] sm:$0xff] %v649
          %666 = vst [vmem:[#allocation4 + $0x60] sm:$0xff] %v650
          %667 = vst [vmem:[#allocation4 + $0x68] sm:$0xff] %v651
          %668 = vst [vmem:[#allocation4 + $0x70] sm:$0xff] %v652
          %669 = vst [vmem:[#allocation4 + $0x78] sm:$0xff] %v653
        $region75: #{sae_forward.1} parent=58 // pred_fallthru
          _
        %v670 = vld [vmem:[#allocation4] sm:$0xff]
        %v671 = vld [vmem:[#allocation4 + $0x8] sm:$0xff]
        %v672 = vld [vmem:[#allocation4 + $0x10] sm:$0xff]
        %v673 = vld [vmem:[#allocation4 + $0x18] sm:$0xff]
        %v674 = vld [vmem:[#allocation4 + $0x20] sm:$0xff]
        %v675 = vld [vmem:[#allocation4 + $0x28] sm:$0xff]
        %v676 = vld [vmem:[#allocation4 + $0x30] sm:$0xff]
        %v677 = vld [vmem:[#allocation4 + $0x38] sm:$0xff]
        %v678 = vld [vmem:[#allocation4 + $0x40] sm:$0xff]
        %v679 = vld [vmem:[#allocation4 + $0x48] sm:$0xff]
        %v680 = vld [vmem:[#allocation4 + $0x50] sm:$0xff]
        %v681 = vld [vmem:[#allocation4 + $0x58] sm:$0xff]
        %v682 = vld [vmem:[#allocation4 + $0x60] sm:$0xff]
        %v683 = vld [vmem:[#allocation4 + $0x68] sm:$0xff]
        %v684 = vld [vmem:[#allocation4 + $0x70] sm:$0xff]
        %v685 = vld [vmem:[#allocation4 + $0x78] sm:$0xff]
        %v686 = vld [vmem:[%s455] sm:$0xff]
        %v687 = vld [vmem:[%s455 + $0x8] sm:$0xff]
        %v688 = vld [vmem:[%s455 + $0x10] sm:$0xff]
        %v689 = vld [vmem:[%s455 + $0x18] sm:$0xff]
        %v690 = vld [vmem:[%s455 + $0x20] sm:$0xff]
        %v691 = vld [vmem:[%s455 + $0x28] sm:$0xff]
        %v692 = vld [vmem:[%s455 + $0x30] sm:$0xff]
        %v693 = vld [vmem:[%s455 + $0x38] sm:$0xff]
        %v694 = vld [vmem:[%s455 + $0x40] sm:$0xff]
        %v695 = vld [vmem:[%s455 + $0x48] sm:$0xff]
        %v696 = vld [vmem:[%s455 + $0x50] sm:$0xff]
        %v697 = vld [vmem:[%s455 + $0x58] sm:$0xff]
        %v698 = vld [vmem:[%s455 + $0x60] sm:$0xff]
        %v699 = vld [vmem:[%s455 + $0x68] sm:$0xff]
        %v700 = vld [vmem:[%s455 + $0x70] sm:$0xff]
        %v701 = vld [vmem:[%s455 + $0x78] sm:$0xff]
        %v702 = vld [vmem:[%s455 + $0x80] sm:$0xff]
        %v703 = vld [vmem:[%s455 + $0x88] sm:$0xff]
        %v704 = vld [vmem:[%s455 + $0x90] sm:$0xff]
        %v705 = vld [vmem:[%s455 + $0x98] sm:$0xff]
        %v706 = vld [vmem:[%s455 + $0xa0] sm:$0xff]
        %v707 = vld [vmem:[%s455 + $0xa8] sm:$0xff]
        %v708 = vld [vmem:[%s455 + $0xb0] sm:$0xff]
        %v709 = vld [vmem:[%s455 + $0xb8] sm:$0xff]
        %v710 = vld [vmem:[%s455 + $0xc0] sm:$0xff]
        %v711 = vld [vmem:[%s455 + $0xc8] sm:$0xff]
        %v712 = vld [vmem:[%s455 + $0xd0] sm:$0xff]
        %v713 = vld [vmem:[%s455 + $0xd8] sm:$0xff]
        %v714 = vld [vmem:[%s455 + $0xe0] sm:$0xff]
        %v715 = vld [vmem:[%s455 + $0xe8] sm:$0xff]
        %v716 = vld [vmem:[%s455 + $0xf0] sm:$0xff]
        %v717 = vld [vmem:[%s455 + $0xf8] sm:$0xff]
        %v718 = vld [vmem:[%s455 + $0x100] sm:$0xff]
        %v719 = vld [vmem:[%s455 + $0x108] sm:$0xff]
        %v720 = vld [vmem:[%s455 + $0x110] sm:$0xff]
        %v721 = vld [vmem:[%s455 + $0x118] sm:$0xff]
        %v722 = vld [vmem:[%s455 + $0x120] sm:$0xff]
        %v723 = vld [vmem:[%s455 + $0x128] sm:$0xff]
        %v724 = vld [vmem:[%s455 + $0x130] sm:$0xff]
        %v725 = vld [vmem:[%s455 + $0x138] sm:$0xff]
        %v726 = vld [vmem:[%s455 + $0x140] sm:$0xff]
        %v727 = vld [vmem:[%s455 + $0x148] sm:$0xff]
        %v728 = vld [vmem:[%s455 + $0x150] sm:$0xff]
        %v729 = vld [vmem:[%s455 + $0x158] sm:$0xff]
        %v730 = vld [vmem:[%s455 + $0x160] sm:$0xff]
        %v731 = vld [vmem:[%s455 + $0x168] sm:$0xff]
        %v732 = vld [vmem:[%s455 + $0x170] sm:$0xff]
        %v733 = vld [vmem:[%s455 + $0x178] sm:$0xff]
        %v734 = vld [vmem:[%s455 + $0x180] sm:$0xff]
        %v735 = vld [vmem:[%s455 + $0x188] sm:$0xff]
        %v736 = vld [vmem:[%s455 + $0x190] sm:$0xff]
        %v737 = vld [vmem:[%s455 + $0x198] sm:$0xff]
        %v738 = vld [vmem:[%s455 + $0x1a0] sm:$0xff]
        %v739 = vld [vmem:[%s455 + $0x1a8] sm:$0xff]
        %v740 = vld [vmem:[%s455 + $0x1b0] sm:$0xff]
        %v741 = vld [vmem:[%s455 + $0x1b8] sm:$0xff]
        %v742 = vld [vmem:[%s455 + $0x1c0] sm:$0xff]
        %v743 = vld [vmem:[%s455 + $0x1c8] sm:$0xff]
        %v744 = vld [vmem:[%s455 + $0x1d0] sm:$0xff]
        %v745 = vld [vmem:[%s455 + $0x1d8] sm:$0xff]
        %v746 = vld [vmem:[%s455 + $0x1e0] sm:$0xff]
        %v747 = vld [vmem:[%s455 + $0x1e8] sm:$0xff]
        %v748 = vld [vmem:[%s455 + $0x1f0] sm:$0xff]
        %v749 = vld [vmem:[%s455 + $0x1f8] sm:$0xff]
        %v750 = vld [vmem:[%s455 + $0x200] sm:$0xff]
        %v751 = vld [vmem:[%s455 + $0x208] sm:$0xff]
        %v752 = vld [vmem:[%s455 + $0x210] sm:$0xff]
        %v753 = vld [vmem:[%s455 + $0x218] sm:$0xff]
        %v754 = vld [vmem:[%s455 + $0x220] sm:$0xff]
        %v755 = vld [vmem:[%s455 + $0x228] sm:$0xff]
        %v756 = vld [vmem:[%s455 + $0x230] sm:$0xff]
        %v757 = vld [vmem:[%s455 + $0x238] sm:$0xff]
        %v758 = vld [vmem:[%s455 + $0x240] sm:$0xff]
        %v759 = vld [vmem:[%s455 + $0x248] sm:$0xff]
        %v760 = vld [vmem:[%s455 + $0x250] sm:$0xff]
        %v761 = vld [vmem:[%s455 + $0x258] sm:$0xff]
        %v762 = vld [vmem:[%s455 + $0x260] sm:$0xff]
        %v763 = vld [vmem:[%s455 + $0x268] sm:$0xff]
        %v764 = vld [vmem:[%s455 + $0x270] sm:$0xff]
        %v765 = vld [vmem:[%s455 + $0x278] sm:$0xff]
        %v766 = vld [vmem:[%s455 + $0x280] sm:$0xff]
        %v767 = vld [vmem:[%s455 + $0x288] sm:$0xff]
        %v768 = vld [vmem:[%s455 + $0x290] sm:$0xff]
        %v769 = vld [vmem:[%s455 + $0x298] sm:$0xff]
        %v770 = vld [vmem:[%s455 + $0x2a0] sm:$0xff]
        %v771 = vld [vmem:[%s455 + $0x2a8] sm:$0xff]
        %v772 = vld [vmem:[%s455 + $0x2b0] sm:$0xff]
        %v773 = vld [vmem:[%s455 + $0x2b8] sm:$0xff]
        %v774 = vld [vmem:[%s455 + $0x2c0] sm:$0xff]
        %v775 = vld [vmem:[%s455 + $0x2c8] sm:$0xff]
        %v776 = vld [vmem:[%s455 + $0x2d0] sm:$0xff]
        %v777 = vld [vmem:[%s455 + $0x2d8] sm:$0xff]
        %v778 = vld [vmem:[%s455 + $0x2e0] sm:$0xff]
        %v779 = vld [vmem:[%s455 + $0x2e8] sm:$0xff]
        %v780 = vld [vmem:[%s455 + $0x2f0] sm:$0xff]
        %v781 = vld [vmem:[%s455 + $0x2f8] sm:$0xff]
        %v782 = vld [vmem:[%s455 + $0x300] sm:$0xff]
        %v783 = vld [vmem:[%s455 + $0x308] sm:$0xff]
        %v784 = vld [vmem:[%s455 + $0x310] sm:$0xff]
        %v785 = vld [vmem:[%s455 + $0x318] sm:$0xff]
        %v786 = vld [vmem:[%s455 + $0x320] sm:$0xff]
        %v787 = vld [vmem:[%s455 + $0x328] sm:$0xff]
        %v788 = vld [vmem:[%s455 + $0x330] sm:$0xff]
        %v789 = vld [vmem:[%s455 + $0x338] sm:$0xff]
        %v790 = vld [vmem:[%s455 + $0x340] sm:$0xff]
        %v791 = vld [vmem:[%s455 + $0x348] sm:$0xff]
        %v792 = vld [vmem:[%s455 + $0x350] sm:$0xff]
        %v793 = vld [vmem:[%s455 + $0x358] sm:$0xff]
        %v794 = vld [vmem:[%s455 + $0x360] sm:$0xff]
        %v795 = vld [vmem:[%s455 + $0x368] sm:$0xff]
        %v796 = vld [vmem:[%s455 + $0x370] sm:$0xff]
        %v797 = vld [vmem:[%s455 + $0x378] sm:$0xff]
        %v798 = vld [vmem:[%s455 + $0x380] sm:$0xff]
        %v799 = vld [vmem:[%s455 + $0x388] sm:$0xff]
        %v800 = vld [vmem:[%s455 + $0x390] sm:$0xff]
        %v801 = vld [vmem:[%s455 + $0x398] sm:$0xff]
        %v802 = vld [vmem:[%s455 + $0x3a0] sm:$0xff]
        %v803 = vld [vmem:[%s455 + $0x3a8] sm:$0xff]
        %v804 = vld [vmem:[%s455 + $0x3b0] sm:$0xff]
        %v805 = vld [vmem:[%s455 + $0x3b8] sm:$0xff]
        %v806 = vld [vmem:[%s455 + $0x3c0] sm:$0xff]
        %v807 = vld [vmem:[%s455 + $0x3c8] sm:$0xff]
        %v808 = vld [vmem:[%s455 + $0x3d0] sm:$0xff]
        %v809 = vld [vmem:[%s455 + $0x3d8] sm:$0xff]
        %v810 = vld [vmem:[%s455 + $0x3e0] sm:$0xff]
        %v811 = vld [vmem:[%s455 + $0x3e8] sm:$0xff]
        %v812 = vld [vmem:[%s455 + $0x3f0] sm:$0xff]
        %v813 = vld [vmem:[%s455 + $0x3f8] sm:$0xff]
        %v814 = vld [vmem:[%s550] sm:$0xf]
        %v816 = vlaneseq
        %v817 = vshrl.u32 %v816, 7
        %v818 = vsub.s32 0, %v817
        %v819 = vrot.slane %v814, %v818
        %v820 = vlaneseq
        %v821 = vshrl.u32 %v820, 7
        %v822 = vsub.s32 1, %v821
        %v823 = vrot.slane %v814, %v822
        %v824 = vlaneseq
        %v825 = vshrl.u32 %v824, 7
        %v826 = vsub.s32 2, %v825
        %v827 = vrot.slane %v814, %v826
        %v828 = vlaneseq
        %v829 = vshrl.u32 %v828, 7
        %v830 = vsub.s32 3, %v829
        %v831 = vrot.slane %v814, %v830
        %836 = vmatprep.subr.mxu0 %v687
        %837 = vmatpush1.msra.mxu0 %v686
        %838 = vmatprep.subr.mxu0 %v691
        %839 = vmatpush1.msra.mxu0 %v690
        %840 = vmatprep.subr.mxu0 %v695
        %841 = vmatpush1.msra.mxu0 %v694
        %842 = vmatprep.subr.mxu0 %v699
        %843 = vmatpush1.msra.mxu0 %v698
        %844 = vmatprep.subr.mxu0 %v703
        %845 = vmatpush1.msra.mxu0 %v702
        %846 = vmatprep.subr.mxu0 %v707
        %847 = vmatpush1.msra.mxu0 %v706
        %848 = vmatprep.subr.mxu0 %v711
        %849 = vmatpush1.msra.mxu0 %v710
        %850 = vmatprep.subr.mxu0 %v715
        %851 = vmatpush1.msra.mxu0 %v714
        %852 = vmatprep.subr.mxu0 %v719
        %853 = vmatpush1.msra.mxu0 %v718
        %854 = vmatprep.subr.mxu0 %v723
        %855 = vmatpush1.msra.mxu0 %v722
        %856 = vmatprep.subr.mxu0 %v727
        %857 = vmatpush1.msra.mxu0 %v726
        %858 = vmatprep.subr.mxu0 %v731
        %859 = vmatpush1.msra.mxu0 %v730
        %860 = vmatprep.subr.mxu0 %v735
        %861 = vmatpush1.msra.mxu0 %v734
        %862 = vmatprep.subr.mxu0 %v739
        %863 = vmatpush1.msra.mxu0 %v738
        %864 = vmatprep.subr.mxu0 %v743
        %865 = vmatpush1.msra.mxu0 %v742
        %866 = vmatprep.subr.mxu0 %v747
        %867 = vmatpush1.msra.mxu0 %v746
        %868 = vmatprep.subr.mxu0 %v751
        %869 = vmatpush1.msra.mxu0 %v750
        %870 = vmatprep.subr.mxu0 %v755
        %871 = vmatpush1.msra.mxu0 %v754
        %872 = vmatprep.subr.mxu0 %v759
        %873 = vmatpush1.msra.mxu0 %v758
        %874 = vmatprep.subr.mxu0 %v763
        %875 = vmatpush1.msra.mxu0 %v762
        %876 = vmatprep.subr.mxu0 %v767
        %877 = vmatpush1.msra.mxu0 %v766
        %878 = vmatprep.subr.mxu0 %v771
        %879 = vmatpush1.msra.mxu0 %v770
        %880 = vmatprep.subr.mxu0 %v775
        %881 = vmatpush1.msra.mxu0 %v774
        %882 = vmatprep.subr.mxu0 %v779
        %883 = vmatpush1.msra.mxu0 %v778
        %884 = vmatprep.subr.mxu0 %v783
        %885 = vmatpush1.msra.mxu0 %v782
        %886 = vmatprep.subr.mxu0 %v787
        %887 = vmatpush1.msra.mxu0 %v786
        %888 = vmatprep.subr.mxu0 %v791
        %889 = vmatpush1.msra.mxu0 %v790
        %890 = vmatprep.subr.mxu0 %v795
        %891 = vmatpush1.msra.mxu0 %v794
        %892 = vmatprep.subr.mxu0 %v799
        %893 = vmatpush1.msra.mxu0 %v798
        %894 = vmatprep.subr.mxu0 %v803
        %895 = vmatpush1.msra.mxu0 %v802
        %896 = vmatprep.subr.mxu0 %v807
        %897 = vmatpush1.msra.mxu0 %v806
        %898 = vmatprep.subr.mxu0 %v811
        %899 = vmatpush1.msra.mxu0 %v810
        %900 = vmatprep.mubr.f32.mxu0 %v671
        %901 = vmatmul.mubr.f32.gmra.mrb[0].mxu0 %v670
        %v902 = vpop.f32.mrb[0].mxu0
        %v903 = vadd.f32 %v819, %v902
        %v904 = vpop.f32.mrb[0].mxu0
        %v905 = vadd.f32 %v823, %v904
        %906 = vmatprep.mubr.f32.mxu0 %v673
        %907 = vmatmul.mubr.f32.gmra.mrb[0].mxu0 %v672
        %v908 = vpop.f32.mrb[0].mxu0
        %v909 = vadd.f32 %v819, %v908
        %v910 = vpop.f32.mrb[0].mxu0
        %v911 = vadd.f32 %v823, %v910
        %912 = vmatprep.mubr.f32.mxu0 %v675
        %913 = vmatmul.mubr.f32.gmra.mrb[0].mxu0 %v674
        %v914 = vpop.f32.mrb[0].mxu0
        %v915 = vadd.f32 %v819, %v914
        %v916 = vpop.f32.mrb[0].mxu0
        %v917 = vadd.f32 %v823, %v916
        %918 = vmatprep.mubr.f32.mxu0 %v677
        %919 = vmatmul.mubr.f32.gmra.mrb[0].mxu0 %v676
        %v920 = vpop.f32.mrb[0].mxu0
        %v921 = vadd.f32 %v819, %v920
        %v922 = vpop.f32.mrb[0].mxu0
        %v923 = vadd.f32 %v823, %v922
        %924 = vmatprep.mubr.f32.mxu0 %v679
        %925 = vmatmul.mubr.f32.gmra.mrb[0].mxu0 %v678
        %v926 = vpop.f32.mrb[0].mxu0
        %v927 = vadd.f32 %v819, %v926
        %v928 = vpop.f32.mrb[0].mxu0
        %v929 = vadd.f32 %v823, %v928
        %930 = vmatprep.mubr.f32.mxu0 %v681
        %931 = vmatmul.mubr.f32.gmra.mrb[0].mxu0 %v680
        %v932 = vpop.f32.mrb[0].mxu0
        %v933 = vadd.f32 %v819, %v932
        %v934 = vpop.f32.mrb[0].mxu0
        %v935 = vadd.f32 %v823, %v934
        %936 = vmatprep.mubr.f32.mxu0 %v683
        %937 = vmatmul.mubr.f32.gmra.mrb[0].mxu0 %v682
        %v938 = vpop.f32.mrb[0].mxu0
        %v939 = vadd.f32 %v819, %v938
        %v940 = vpop.f32.mrb[0].mxu0
        %v941 = vadd.f32 %v823, %v940
        %942 = vmatprep.mubr.f32.mxu0 %v685
        %943 = vmatmul.mubr.f32.gmra.mrb[0].mxu0 %v684
        %v944 = vpop.f32.mrb[0].mxu0
        %v945 = vadd.f32 %v819, %v944
        %v946 = vpop.f32.mrb[0].mxu0
        %v947 = vadd.f32 %v823, %v946
        %948 = vdwg.mxu0
        %949 = vmatprep.subr.mxu0 %v689
        %950 = vmatpush1.msra.mxu0 %v688
        %951 = vmatprep.subr.mxu0 %v693
        %952 = vmatpush1.msra.mxu0 %v692
        %953 = vmatprep.subr.mxu0 %v697
        %954 = vmatpush1.msra.mxu0 %v696
        %955 = vmatprep.subr.mxu0 %v701
        %956 = vmatpush1.msra.mxu0 %v700
        %957 = vmatprep.subr.mxu0 %v705
        %958 = vmatpush1.msra.mxu0 %v704
        %959 = vmatprep.subr.mxu0 %v709
        %960 = vmatpush1.msra.mxu0 %v708
        %961 = vmatprep.subr.mxu0 %v713
        %962 = vmatpush1.msra.mxu0 %v712
        %963 = vmatprep.subr.mxu0 %v717
        %964 = vmatpush1.msra.mxu0 %v716
        %965 = vmatprep.subr.mxu0 %v721
        %966 = vmatpush1.msra.mxu0 %v720
        %967 = vmatprep.subr.mxu0 %v725
        %968 = vmatpush1.msra.mxu0 %v724
        %969 = vmatprep.subr.mxu0 %v729
        %970 = vmatpush1.msra.mxu0 %v728
        %971 = vmatprep.subr.mxu0 %v733
        %972 = vmatpush1.msra.mxu0 %v732
        %973 = vmatprep.subr.mxu0 %v737
        %974 = vmatpush1.msra.mxu0 %v736
        %975 = vmatprep.subr.mxu0 %v741
        %976 = vmatpush1.msra.mxu0 %v740
        %977 = vmatprep.subr.mxu0 %v745
        %978 = vmatpush1.msra.mxu0 %v744
        %979 = vmatprep.subr.mxu0 %v749
        %980 = vmatpush1.msra.mxu0 %v748
        %981 = vmatprep.subr.mxu0 %v753
        %982 = vmatpush1.msra.mxu0 %v752
        %983 = vmatprep.subr.mxu0 %v757
        %984 = vmatpush1.msra.mxu0 %v756
        %985 = vmatprep.subr.mxu0 %v761
        %986 = vmatpush1.msra.mxu0 %v760
        %987 = vmatprep.subr.mxu0 %v765
        %988 = vmatpush1.msra.mxu0 %v764
        %989 = vmatprep.subr.mxu0 %v769
        %990 = vmatpush1.msra.mxu0 %v768
        %991 = vmatprep.subr.mxu0 %v773
        %992 = vmatpush1.msra.mxu0 %v772
        %993 = vmatprep.subr.mxu0 %v777
        %994 = vmatpush1.msra.mxu0 %v776
        %995 = vmatprep.subr.mxu0 %v781
        %996 = vmatpush1.msra.mxu0 %v780
        %997 = vmatprep.subr.mxu0 %v785
        %998 = vmatpush1.msra.mxu0 %v784
        %999 = vmatprep.subr.mxu0 %v789
        %1000 = vmatpush1.msra.mxu0 %v788
        %1001 = vmatprep.subr.mxu0 %v793
        %1002 = vmatpush1.msra.mxu0 %v792
        %1003 = vmatprep.subr.mxu0 %v797
        %1004 = vmatpush1.msra.mxu0 %v796
        %1005 = vmatprep.subr.mxu0 %v801
        %1006 = vmatpush1.msra.mxu0 %v800
        %1007 = vmatprep.subr.mxu0 %v805
        %1008 = vmatpush1.msra.mxu0 %v804
        %1009 = vmatprep.subr.mxu0 %v809
        %1010 = vmatpush1.msra.mxu0 %v808
        %1011 = vmatprep.subr.mxu0 %v813
        %1012 = vmatpush1.msra.mxu0 %v812
        %1013 = vmatprep.mubr.f32.mxu0 %v671
        %1014 = vmatmul.mubr.f32.gmra.mrb[0].mxu0 %v670
        %v1015 = vpop.f32.mrb[0].mxu0
        %v1016 = vadd.f32 %v827, %v1015
        %v1017 = vpop.f32.mrb[0].mxu0
        %v1018 = vadd.f32 %v831, %v1017
        %1019 = vmatprep.mubr.f32.mxu0 %v673
        %1020 = vmatmul.mubr.f32.gmra.mrb[0].mxu0 %v672
        %v1021 = vpop.f32.mrb[0].mxu0
        %v1022 = vadd.f32 %v827, %v1021
        %v1023 = vpop.f32.mrb[0].mxu0
        %v1024 = vadd.f32 %v831, %v1023
        %1025 = vmatprep.mubr.f32.mxu0 %v675
        %1026 = vmatmul.mubr.f32.gmra.mrb[0].mxu0 %v674
        %v1027 = vpop.f32.mrb[0].mxu0
        %v1028 = vadd.f32 %v827, %v1027
        %v1029 = vpop.f32.mrb[0].mxu0
        %v1030 = vadd.f32 %v831, %v1029
        %1031 = vmatprep.mubr.f32.mxu0 %v677
        %1032 = vmatmul.mubr.f32.gmra.mrb[0].mxu0 %v676
        %v1033 = vpop.f32.mrb[0].mxu0
        %v1034 = vadd.f32 %v827, %v1033
        %v1035 = vpop.f32.mrb[0].mxu0
        %v1036 = vadd.f32 %v831, %v1035
        %1037 = vmatprep.mubr.f32.mxu0 %v679
        %1038 = vmatmul.mubr.f32.gmra.mrb[0].mxu0 %v678
        %v1039 = vpop.f32.mrb[0].mxu0
        %v1040 = vadd.f32 %v827, %v1039
        %v1041 = vpop.f32.mrb[0].mxu0
        %v1042 = vadd.f32 %v831, %v1041
        %1043 = vmatprep.mubr.f32.mxu0 %v681
        %1044 = vmatmul.mubr.f32.gmra.mrb[0].mxu0 %v680
        %v1045 = vpop.f32.mrb[0].mxu0
        %v1046 = vadd.f32 %v827, %v1045
        %v1047 = vpop.f32.mrb[0].mxu0
        %v1048 = vadd.f32 %v831, %v1047
        %1049 = vmatprep.mubr.f32.mxu0 %v683
        %1050 = vmatmul.mubr.f32.gmra.mrb[0].mxu0 %v682
        %v1051 = vpop.f32.mrb[0].mxu0
        %v1052 = vadd.f32 %v827, %v1051
        %v1053 = vpop.f32.mrb[0].mxu0
        %v1054 = vadd.f32 %v831, %v1053
        %1055 = vmatprep.mubr.f32.mxu0 %v685
        %1056 = vmatmul.mubr.f32.gmra.mrb[0].mxu0 %v684
        %v1057 = vpop.f32.mrb[0].mxu0
        %v1058 = vadd.f32 %v827, %v1057
        %v1059 = vpop.f32.mrb[0].mxu0
        %v1060 = vadd.f32 %v831, %v1059
        %1061 = vdwg.mxu0
        %v1062 = vmax.f32 %v903, 0.0
        %v1063 = vmax.f32 %v905, 0.0
        %v1064 = vmax.f32 %v1016, 0.0
        %v1065 = vmax.f32 %v1018, 0.0
        %v1066 = vmax.f32 %v909, 0.0
        %v1067 = vmax.f32 %v911, 0.0
        %v1068 = vmax.f32 %v1022, 0.0
        %v1069 = vmax.f32 %v1024, 0.0
        %v1070 = vmax.f32 %v915, 0.0
        %v1071 = vmax.f32 %v917, 0.0
        %v1072 = vmax.f32 %v1028, 0.0
        %v1073 = vmax.f32 %v1030, 0.0
        %v1074 = vmax.f32 %v921, 0.0
        %v1075 = vmax.f32 %v923, 0.0
        %v1076 = vmax.f32 %v1034, 0.0
        %v1077 = vmax.f32 %v1036, 0.0
        %v1078 = vmax.f32 %v927, 0.0
        %v1079 = vmax.f32 %v929, 0.0
        %v1080 = vmax.f32 %v1040, 0.0
        %v1081 = vmax.f32 %v1042, 0.0
        %v1082 = vmax.f32 %v933, 0.0
        %v1083 = vmax.f32 %v935, 0.0
        %v1084 = vmax.f32 %v1046, 0.0
        %v1085 = vmax.f32 %v1048, 0.0
        %v1086 = vmax.f32 %v939, 0.0
        %v1087 = vmax.f32 %v941, 0.0
        %v1088 = vmax.f32 %v1052, 0.0
        %v1089 = vmax.f32 %v1054, 0.0
        %v1090 = vmax.f32 %v945, 0.0
        %v1091 = vmax.f32 %v947, 0.0
        %v1092 = vmax.f32 %v1058, 0.0
        %v1093 = vmax.f32 %v1060, 0.0
        %1094 = vst [vmem:[%s510] sm:$0xff] %v1062
        %1095 = vst [vmem:[%s510 + $0x8] sm:$0xff] %v1063
        %1096 = vst [vmem:[%s510 + $0x10] sm:$0xff] %v1064
        %1097 = vst [vmem:[%s510 + $0x18] sm:$0xff] %v1065
        %1098 = vst [vmem:[%s510 + $0x20] sm:$0xff] %v1066
        %1099 = vst [vmem:[%s510 + $0x28] sm:$0xff] %v1067
        %1100 = vst [vmem:[%s510 + $0x30] sm:$0xff] %v1068
        %1101 = vst [vmem:[%s510 + $0x38] sm:$0xff] %v1069
        %1102 = vst [vmem:[%s510 + $0x40] sm:$0xff] %v1070
        %1103 = vst [vmem:[%s510 + $0x48] sm:$0xff] %v1071
        %1104 = vst [vmem:[%s510 + $0x50] sm:$0xff] %v1072
        %1105 = vst [vmem:[%s510 + $0x58] sm:$0xff] %v1073
        %1106 = vst [vmem:[%s510 + $0x60] sm:$0xff] %v1074
        %1107 = vst [vmem:[%s510 + $0x68] sm:$0xff] %v1075
        %1108 = vst [vmem:[%s510 + $0x70] sm:$0xff] %v1076
        %1109 = vst [vmem:[%s510 + $0x78] sm:$0xff] %v1077
        %1110 = vst [vmem:[%s510 + $0x80] sm:$0xff] %v1078
        %1111 = vst [vmem:[%s510 + $0x88] sm:$0xff] %v1079
        %1112 = vst [vmem:[%s510 + $0x90] sm:$0xff] %v1080
        %1113 = vst [vmem:[%s510 + $0x98] sm:$0xff] %v1081
        %1114 = vst [vmem:[%s510 + $0xa0] sm:$0xff] %v1082
        %1115 = vst [vmem:[%s510 + $0xa8] sm:$0xff] %v1083
        %1116 = vst [vmem:[%s510 + $0xb0] sm:$0xff] %v1084
        %1117 = vst [vmem:[%s510 + $0xb8] sm:$0xff] %v1085
        %1118 = vst [vmem:[%s510 + $0xc0] sm:$0xff] %v1086
        %1119 = vst [vmem:[%s510 + $0xc8] sm:$0xff] %v1087
        %1120 = vst [vmem:[%s510 + $0xd0] sm:$0xff] %v1088
        %1121 = vst [vmem:[%s510 + $0xd8] sm:$0xff] %v1089
        %1122 = vst [vmem:[%s510 + $0xe0] sm:$0xff] %v1090
        %1123 = vst [vmem:[%s510 + $0xe8] sm:$0xff] %v1091
        %1124 = vst [vmem:[%s510 + $0xf0] sm:$0xff] %v1092
        %1125 = vst [vmem:[%s510 + $0xf8] sm:$0xff] %v1093
        %v1126 = vld [vmem:[#allocation2] sm:$0xff]
        %v1127 = vld [vmem:[#allocation2 + $0x8] sm:$0xff]
        %v1128 = vld [vmem:[#allocation2 + $0x10] sm:$0xff]
        %v1129 = vld [vmem:[#allocation2 + $0x18] sm:$0xff]
        %v1130 = vld [vmem:[#allocation2 + $0x20] sm:$0xff]
        %v1131 = vld [vmem:[#allocation2 + $0x28] sm:$0xff]
        %v1132 = vld [vmem:[#allocation2 + $0x30] sm:$0xff]
        %v1133 = vld [vmem:[#allocation2 + $0x38] sm:$0xff]
        %v1134 = vld [vmem:[#allocation2 + $0x40] sm:$0xff]
        %v1135 = vld [vmem:[#allocation2 + $0x48] sm:$0xff]
        %v1136 = vld [vmem:[#allocation2 + $0x50] sm:$0xff]
        %v1137 = vld [vmem:[#allocation2 + $0x58] sm:$0xff]
        %v1138 = vld [vmem:[#allocation2 + $0x60] sm:$0xff]
        %v1139 = vld [vmem:[#allocation2 + $0x68] sm:$0xff]
        %v1140 = vld [vmem:[#allocation2 + $0x70] sm:$0xff]
        %v1141 = vld [vmem:[#allocation2 + $0x78] sm:$0xff]
        %v1142 = vld [vmem:[%s464] sm:$0xff]
        %v1143 = vld [vmem:[%s464 + $0x8] sm:$0xff]
        %v1144 = vld [vmem:[%s464 + $0x10] sm:$0xff]
        %v1145 = vld [vmem:[%s464 + $0x18] sm:$0xff]
        %v1146 = vld [vmem:[%s464 + $0x20] sm:$0xff]
        %v1147 = vld [vmem:[%s464 + $0x28] sm:$0xff]
        %v1148 = vld [vmem:[%s464 + $0x30] sm:$0xff]
        %v1149 = vld [vmem:[%s464 + $0x38] sm:$0xff]
        %v1150 = vld [vmem:[%s464 + $0x40] sm:$0xff]
        %v1151 = vld [vmem:[%s464 + $0x48] sm:$0xff]
        %v1152 = vld [vmem:[%s464 + $0x50] sm:$0xff]
        %v1153 = vld [vmem:[%s464 + $0x58] sm:$0xff]
        %v1154 = vld [vmem:[%s464 + $0x60] sm:$0xff]
        %v1155 = vld [vmem:[%s464 + $0x68] sm:$0xff]
        %v1156 = vld [vmem:[%s464 + $0x70] sm:$0xff]
        %v1157 = vld [vmem:[%s464 + $0x78] sm:$0xff]
        %v1158 = vld [vmem:[%s464 + $0x80] sm:$0xff]
        %v1159 = vld [vmem:[%s464 + $0x88] sm:$0xff]
        %v1160 = vld [vmem:[%s464 + $0x90] sm:$0xff]
        %v1161 = vld [vmem:[%s464 + $0x98] sm:$0xff]
        %v1162 = vld [vmem:[%s464 + $0xa0] sm:$0xff]
        %v1163 = vld [vmem:[%s464 + $0xa8] sm:$0xff]
        %v1164 = vld [vmem:[%s464 + $0xb0] sm:$0xff]
        %v1165 = vld [vmem:[%s464 + $0xb8] sm:$0xff]
        %v1166 = vld [vmem:[%s464 + $0xc0] sm:$0xff]
        %v1167 = vld [vmem:[%s464 + $0xc8] sm:$0xff]
        %v1168 = vld [vmem:[%s464 + $0xd0] sm:$0xff]
        %v1169 = vld [vmem:[%s464 + $0xd8] sm:$0xff]
        %v1170 = vld [vmem:[%s464 + $0xe0] sm:$0xff]
        %v1171 = vld [vmem:[%s464 + $0xe8] sm:$0xff]
        %v1172 = vld [vmem:[%s464 + $0xf0] sm:$0xff]
        %v1173 = vld [vmem:[%s464 + $0xf8] sm:$0xff]
        %v1174 = vld [vmem:[%s464 + $0x100] sm:$0xff]
        %v1175 = vld [vmem:[%s464 + $0x108] sm:$0xff]
        %v1176 = vld [vmem:[%s464 + $0x110] sm:$0xff]
        %v1177 = vld [vmem:[%s464 + $0x118] sm:$0xff]
        %v1178 = vld [vmem:[%s464 + $0x120] sm:$0xff]
        %v1179 = vld [vmem:[%s464 + $0x128] sm:$0xff]
        %v1180 = vld [vmem:[%s464 + $0x130] sm:$0xff]
        %v1181 = vld [vmem:[%s464 + $0x138] sm:$0xff]
        %v1182 = vld [vmem:[%s464 + $0x140] sm:$0xff]
        %v1183 = vld [vmem:[%s464 + $0x148] sm:$0xff]
        %v1184 = vld [vmem:[%s464 + $0x150] sm:$0xff]
        %v1185 = vld [vmem:[%s464 + $0x158] sm:$0xff]
        %v1186 = vld [vmem:[%s464 + $0x160] sm:$0xff]
        %v1187 = vld [vmem:[%s464 + $0x168] sm:$0xff]
        %v1188 = vld [vmem:[%s464 + $0x170] sm:$0xff]
        %v1189 = vld [vmem:[%s464 + $0x178] sm:$0xff]
        %v1190 = vld [vmem:[%s464 + $0x180] sm:$0xff]
        %v1191 = vld [vmem:[%s464 + $0x188] sm:$0xff]
        %v1192 = vld [vmem:[%s464 + $0x190] sm:$0xff]
        %v1193 = vld [vmem:[%s464 + $0x198] sm:$0xff]
        %v1194 = vld [vmem:[%s464 + $0x1a0] sm:$0xff]
        %v1195 = vld [vmem:[%s464 + $0x1a8] sm:$0xff]
        %v1196 = vld [vmem:[%s464 + $0x1b0] sm:$0xff]
        %v1197 = vld [vmem:[%s464 + $0x1b8] sm:$0xff]
        %v1198 = vld [vmem:[%s464 + $0x1c0] sm:$0xff]
        %v1199 = vld [vmem:[%s464 + $0x1c8] sm:$0xff]
        %v1200 = vld [vmem:[%s464 + $0x1d0] sm:$0xff]
        %v1201 = vld [vmem:[%s464 + $0x1d8] sm:$0xff]
        %v1202 = vld [vmem:[%s464 + $0x1e0] sm:$0xff]
        %v1203 = vld [vmem:[%s464 + $0x1e8] sm:$0xff]
        %v1204 = vld [vmem:[%s464 + $0x1f0] sm:$0xff]
        %v1205 = vld [vmem:[%s464 + $0x1f8] sm:$0xff]
        %v1206 = vld [vmem:[%s464 + $0x200] sm:$0xff]
        %v1207 = vld [vmem:[%s464 + $0x208] sm:$0xff]
        %v1208 = vld [vmem:[%s464 + $0x210] sm:$0xff]
        %v1209 = vld [vmem:[%s464 + $0x218] sm:$0xff]
        %v1210 = vld [vmem:[%s464 + $0x220] sm:$0xff]
        %v1211 = vld [vmem:[%s464 + $0x228] sm:$0xff]
        %v1212 = vld [vmem:[%s464 + $0x230] sm:$0xff]
        %v1213 = vld [vmem:[%s464 + $0x238] sm:$0xff]
        %v1214 = vld [vmem:[%s464 + $0x240] sm:$0xff]
        %v1215 = vld [vmem:[%s464 + $0x248] sm:$0xff]
        %v1216 = vld [vmem:[%s464 + $0x250] sm:$0xff]
        %v1217 = vld [vmem:[%s464 + $0x258] sm:$0xff]
        %v1218 = vld [vmem:[%s464 + $0x260] sm:$0xff]
        %v1219 = vld [vmem:[%s464 + $0x268] sm:$0xff]
        %v1220 = vld [vmem:[%s464 + $0x270] sm:$0xff]
        %v1221 = vld [vmem:[%s464 + $0x278] sm:$0xff]
        %v1222 = vld [vmem:[%s464 + $0x280] sm:$0xff]
        %v1223 = vld [vmem:[%s464 + $0x288] sm:$0xff]
        %v1224 = vld [vmem:[%s464 + $0x290] sm:$0xff]
        %v1225 = vld [vmem:[%s464 + $0x298] sm:$0xff]
        %v1226 = vld [vmem:[%s464 + $0x2a0] sm:$0xff]
        %v1227 = vld [vmem:[%s464 + $0x2a8] sm:$0xff]
        %v1228 = vld [vmem:[%s464 + $0x2b0] sm:$0xff]
        %v1229 = vld [vmem:[%s464 + $0x2b8] sm:$0xff]
        %v1230 = vld [vmem:[%s464 + $0x2c0] sm:$0xff]
        %v1231 = vld [vmem:[%s464 + $0x2c8] sm:$0xff]
        %v1232 = vld [vmem:[%s464 + $0x2d0] sm:$0xff]
        %v1233 = vld [vmem:[%s464 + $0x2d8] sm:$0xff]
        %v1234 = vld [vmem:[%s464 + $0x2e0] sm:$0xff]
        %v1235 = vld [vmem:[%s464 + $0x2e8] sm:$0xff]
        %v1236 = vld [vmem:[%s464 + $0x2f0] sm:$0xff]
        %v1237 = vld [vmem:[%s464 + $0x2f8] sm:$0xff]
        %v1238 = vld [vmem:[%s464 + $0x300] sm:$0xff]
        %v1239 = vld [vmem:[%s464 + $0x308] sm:$0xff]
        %v1240 = vld [vmem:[%s464 + $0x310] sm:$0xff]
        %v1241 = vld [vmem:[%s464 + $0x318] sm:$0xff]
        %v1242 = vld [vmem:[%s464 + $0x320] sm:$0xff]
        %v1243 = vld [vmem:[%s464 + $0x328] sm:$0xff]
        %v1244 = vld [vmem:[%s464 + $0x330] sm:$0xff]
        %v1245 = vld [vmem:[%s464 + $0x338] sm:$0xff]
        %v1246 = vld [vmem:[%s464 + $0x340] sm:$0xff]
        %v1247 = vld [vmem:[%s464 + $0x348] sm:$0xff]
        %v1248 = vld [vmem:[%s464 + $0x350] sm:$0xff]
        %v1249 = vld [vmem:[%s464 + $0x358] sm:$0xff]
        %v1250 = vld [vmem:[%s464 + $0x360] sm:$0xff]
        %v1251 = vld [vmem:[%s464 + $0x368] sm:$0xff]
        %v1252 = vld [vmem:[%s464 + $0x370] sm:$0xff]
        %v1253 = vld [vmem:[%s464 + $0x378] sm:$0xff]
        %v1254 = vld [vmem:[%s464 + $0x380] sm:$0xff]
        %v1255 = vld [vmem:[%s464 + $0x388] sm:$0xff]
        %v1256 = vld [vmem:[%s464 + $0x390] sm:$0xff]
        %v1257 = vld [vmem:[%s464 + $0x398] sm:$0xff]
        %v1258 = vld [vmem:[%s464 + $0x3a0] sm:$0xff]
        %v1259 = vld [vmem:[%s464 + $0x3a8] sm:$0xff]
        %v1260 = vld [vmem:[%s464 + $0x3b0] sm:$0xff]
        %v1261 = vld [vmem:[%s464 + $0x3b8] sm:$0xff]
        %v1262 = vld [vmem:[%s464 + $0x3c0] sm:$0xff]
        %v1263 = vld [vmem:[%s464 + $0x3c8] sm:$0xff]
        %v1264 = vld [vmem:[%s464 + $0x3d0] sm:$0xff]
        %v1265 = vld [vmem:[%s464 + $0x3d8] sm:$0xff]
        %v1266 = vld [vmem:[%s464 + $0x3e0] sm:$0xff]
        %v1267 = vld [vmem:[%s464 + $0x3e8] sm:$0xff]
        %v1268 = vld [vmem:[%s464 + $0x3f0] sm:$0xff]
        %v1269 = vld [vmem:[%s464 + $0x3f8] sm:$0xff]
        %1270 = vmatprep.subr.mxu0 %v1143
        %1271 = vmatpush1.msra.mxu0 %v1142
        %1272 = vmatprep.subr.mxu0 %v1145
        %1273 = vmatpush1.msra.mxu0 %v1144
        %1274 = vmatprep.subr.mxu0 %v1147
        %1275 = vmatpush1.msra.mxu0 %v1146
        %1276 = vmatprep.subr.mxu0 %v1149
        %1277 = vmatpush1.msra.mxu0 %v1148
        %1278 = vmatprep.subr.mxu0 %v1151
        %1279 = vmatpush1.msra.mxu0 %v1150
        %1280 = vmatprep.subr.mxu0 %v1153
        %1281 = vmatpush1.msra.mxu0 %v1152
        %1282 = vmatprep.subr.mxu0 %v1155
        %1283 = vmatpush1.msra.mxu0 %v1154
        %1284 = vmatprep.subr.mxu0 %v1157
        %1285 = vmatpush1.msra.mxu0 %v1156
        %1286 = vmatprep.subr.mxu0 %v1159
        %1287 = vmatpush1.msra.mxu0 %v1158
        %1288 = vmatprep.subr.mxu0 %v1161
        %1289 = vmatpush1.msra.mxu0 %v1160
        %1290 = vmatprep.subr.mxu0 %v1163
        %1291 = vmatpush1.msra.mxu0 %v1162
        %1292 = vmatprep.subr.mxu0 %v1165
        %1293 = vmatpush1.msra.mxu0 %v1164
        %1294 = vmatprep.subr.mxu0 %v1167
        %1295 = vmatpush1.msra.mxu0 %v1166
        %1296 = vmatprep.subr.mxu0 %v1169
        %1297 = vmatpush1.msra.mxu0 %v1168
        %1298 = vmatprep.subr.mxu0 %v1171
        %1299 = vmatpush1.msra.mxu0 %v1170
        %1300 = vmatprep.subr.mxu0 %v1173
        %1301 = vmatpush1.msra.mxu0 %v1172
        %1302 = vmatprep.subr.mxu0 %v1175
        %1303 = vmatpush1.msra.mxu0 %v1174
        %1304 = vmatprep.subr.mxu0 %v1177
        %1305 = vmatpush1.msra.mxu0 %v1176
        %1306 = vmatprep.subr.mxu0 %v1179
        %1307 = vmatpush1.msra.mxu0 %v1178
        %1308 = vmatprep.subr.mxu0 %v1181
        %1309 = vmatpush1.msra.mxu0 %v1180
        %1310 = vmatprep.subr.mxu0 %v1183
        %1311 = vmatpush1.msra.mxu0 %v1182
        %1312 = vmatprep.subr.mxu0 %v1185
        %1313 = vmatpush1.msra.mxu0 %v1184
        %1314 = vmatprep.subr.mxu0 %v1187
        %1315 = vmatpush1.msra.mxu0 %v1186
        %1316 = vmatprep.subr.mxu0 %v1189
        %1317 = vmatpush1.msra.mxu0 %v1188
        %1318 = vmatprep.subr.mxu0 %v1191
        %1319 = vmatpush1.msra.mxu0 %v1190
        %1320 = vmatprep.subr.mxu0 %v1193
        %1321 = vmatpush1.msra.mxu0 %v1192
        %1322 = vmatprep.subr.mxu0 %v1195
        %1323 = vmatpush1.msra.mxu0 %v1194
        %1324 = vmatprep.subr.mxu0 %v1197
        %1325 = vmatpush1.msra.mxu0 %v1196
        %1326 = vmatprep.subr.mxu0 %v1199
        %1327 = vmatpush1.msra.mxu0 %v1198
        %1328 = vmatprep.subr.mxu0 %v1201
        %1329 = vmatpush1.msra.mxu0 %v1200
        %1330 = vmatprep.subr.mxu0 %v1203
        %1331 = vmatpush1.msra.mxu0 %v1202
        %1332 = vmatprep.subr.mxu0 %v1205
        %1333 = vmatpush1.msra.mxu0 %v1204
        %1334 = vmatprep.mubr.f32.mxu0 %v1063
        %1335 = vmatmul.mubr.f32.gmra.mrb[0].mxu0 %v1062
        %v1336 = vpop.f32.mrb[0].mxu0
        %v1337 = vadd.f32 0.0, %v1336
        %v1338 = vpop.f32.mrb[0].mxu0
        %v1339 = vadd.f32 0.0, %v1338
        %1340 = vmatprep.mubr.f32.mxu0 %v1067
        %1341 = vmatmul.mubr.f32.gmra.mrb[0].mxu0 %v1066
        %v1342 = vpop.f32.mrb[0].mxu0
        %v1343 = vadd.f32 0.0, %v1342
        %v1344 = vpop.f32.mrb[0].mxu0
        %v1345 = vadd.f32 0.0, %v1344
        %1346 = vmatprep.mubr.f32.mxu0 %v1071
        %1347 = vmatmul.mubr.f32.gmra.mrb[0].mxu0 %v1070
        %v1348 = vpop.f32.mrb[0].mxu0
        %v1349 = vadd.f32 0.0, %v1348
        %v1350 = vpop.f32.mrb[0].mxu0
        %v1351 = vadd.f32 0.0, %v1350
        %1352 = vmatprep.mubr.f32.mxu0 %v1075
        %1353 = vmatmul.mubr.f32.gmra.mrb[0].mxu0 %v1074
        %v1354 = vpop.f32.mrb[0].mxu0
        %v1355 = vadd.f32 0.0, %v1354
        %v1356 = vpop.f32.mrb[0].mxu0
        %v1357 = vadd.f32 0.0, %v1356
        %1358 = vmatprep.mubr.f32.mxu0 %v1079
        %1359 = vmatmul.mubr.f32.gmra.mrb[0].mxu0 %v1078
        %v1360 = vpop.f32.mrb[0].mxu0
        %v1361 = vadd.f32 0.0, %v1360
        %v1362 = vpop.f32.mrb[0].mxu0
        %v1363 = vadd.f32 0.0, %v1362
        %1364 = vmatprep.mubr.f32.mxu0 %v1083
        %1365 = vmatmul.mubr.f32.gmra.mrb[0].mxu0 %v1082
        %v1366 = vpop.f32.mrb[0].mxu0
        %v1367 = vadd.f32 0.0, %v1366
        %v1368 = vpop.f32.mrb[0].mxu0
        %v1369 = vadd.f32 0.0, %v1368
        %1370 = vmatprep.mubr.f32.mxu0 %v1087
        %1371 = vmatmul.mubr.f32.gmra.mrb[0].mxu0 %v1086
        %v1372 = vpop.f32.mrb[0].mxu0
        %v1373 = vadd.f32 0.0, %v1372
        %v1374 = vpop.f32.mrb[0].mxu0
        %v1375 = vadd.f32 0.0, %v1374
        %1376 = vmatprep.mubr.f32.mxu0 %v1091
        %1377 = vmatmul.mubr.f32.gmra.mrb[0].mxu0 %v1090
        %v1378 = vpop.f32.mrb[0].mxu0
        %v1379 = vadd.f32 0.0, %v1378
        %v1380 = vpop.f32.mrb[0].mxu0
        %v1381 = vadd.f32 0.0, %v1380
        %1382 = vdwg.mxu0
        %1383 = vmatprep.subr.mxu0 %v1207
        %1384 = vmatpush1.msra.mxu0 %v1206
        %1385 = vmatprep.subr.mxu0 %v1209
        %1386 = vmatpush1.msra.mxu0 %v1208
        %1387 = vmatprep.subr.mxu0 %v1211
        %1388 = vmatpush1.msra.mxu0 %v1210
        %1389 = vmatprep.subr.mxu0 %v1213
        %1390 = vmatpush1.msra.mxu0 %v1212
        %1391 = vmatprep.subr.mxu0 %v1215
        %1392 = vmatpush1.msra.mxu0 %v1214
        %1393 = vmatprep.subr.mxu0 %v1217
        %1394 = vmatpush1.msra.mxu0 %v1216
        %1395 = vmatprep.subr.mxu0 %v1219
        %1396 = vmatpush1.msra.mxu0 %v1218
        %1397 = vmatprep.subr.mxu0 %v1221
        %1398 = vmatpush1.msra.mxu0 %v1220
        %1399 = vmatprep.subr.mxu0 %v1223
        %1400 = vmatpush1.msra.mxu0 %v1222
        %1401 = vmatprep.subr.mxu0 %v1225
        %1402 = vmatpush1.msra.mxu0 %v1224
        %1403 = vmatprep.subr.mxu0 %v1227
        %1404 = vmatpush1.msra.mxu0 %v1226
        %1405 = vmatprep.subr.mxu0 %v1229
        %1406 = vmatpush1.msra.mxu0 %v1228
        %1407 = vmatprep.subr.mxu0 %v1231
        %1408 = vmatpush1.msra.mxu0 %v1230
        %1409 = vmatprep.subr.mxu0 %v1233
        %1410 = vmatpush1.msra.mxu0 %v1232
        %1411 = vmatprep.subr.mxu0 %v1235
        %1412 = vmatpush1.msra.mxu0 %v1234
        %1413 = vmatprep.subr.mxu0 %v1237
        %1414 = vmatpush1.msra.mxu0 %v1236
        %1415 = vmatprep.subr.mxu0 %v1239
        %1416 = vmatpush1.msra.mxu0 %v1238
        %1417 = vmatprep.subr.mxu0 %v1241
        %1418 = vmatpush1.msra.mxu0 %v1240
        %1419 = vmatprep.subr.mxu0 %v1243
        %1420 = vmatpush1.msra.mxu0 %v1242
        %1421 = vmatprep.subr.mxu0 %v1245
        %1422 = vmatpush1.msra.mxu0 %v1244
        %1423 = vmatprep.subr.mxu0 %v1247
        %1424 = vmatpush1.msra.mxu0 %v1246
        %1425 = vmatprep.subr.mxu0 %v1249
        %1426 = vmatpush1.msra.mxu0 %v1248
        %1427 = vmatprep.subr.mxu0 %v1251
        %1428 = vmatpush1.msra.mxu0 %v1250
        %1429 = vmatprep.subr.mxu0 %v1253
        %1430 = vmatpush1.msra.mxu0 %v1252
        %1431 = vmatprep.subr.mxu0 %v1255
        %1432 = vmatpush1.msra.mxu0 %v1254
        %1433 = vmatprep.subr.mxu0 %v1257
        %1434 = vmatpush1.msra.mxu0 %v1256
        %1435 = vmatprep.subr.mxu0 %v1259
        %1436 = vmatpush1.msra.mxu0 %v1258
        %1437 = vmatprep.subr.mxu0 %v1261
        %1438 = vmatpush1.msra.mxu0 %v1260
        %1439 = vmatprep.subr.mxu0 %v1263
        %1440 = vmatpush1.msra.mxu0 %v1262
        %1441 = vmatprep.subr.mxu0 %v1265
        %1442 = vmatpush1.msra.mxu0 %v1264
        %1443 = vmatprep.subr.mxu0 %v1267
        %1444 = vmatpush1.msra.mxu0 %v1266
        %1445 = vmatprep.subr.mxu0 %v1269
        %1446 = vmatpush1.msra.mxu0 %v1268
        %1447 = vmatprep.mubr.f32.mxu0 %v1065
        %1448 = vmatmul.mubr.f32.gmra.mrb[0].mxu0 %v1064
        %v1449 = vpop.f32.mrb[0].mxu0
        %v1450 = vadd.f32 %v1337, %v1449
        %v1451 = vpop.f32.mrb[0].mxu0
        %v1452 = vadd.f32 %v1339, %v1451
        %1453 = vmatprep.mubr.f32.mxu0 %v1069
        %1454 = vmatmul.mubr.f32.gmra.mrb[0].mxu0 %v1068
        %v1455 = vpop.f32.mrb[0].mxu0
        %v1456 = vadd.f32 %v1343, %v1455
        %v1457 = vpop.f32.mrb[0].mxu0
        %v1458 = vadd.f32 %v1345, %v1457
        %1459 = vmatprep.mubr.f32.mxu0 %v1073
        %1460 = vmatmul.mubr.f32.gmra.mrb[0].mxu0 %v1072
        %v1461 = vpop.f32.mrb[0].mxu0
        %v1462 = vadd.f32 %v1349, %v1461
        %v1463 = vpop.f32.mrb[0].mxu0
        %v1464 = vadd.f32 %v1351, %v1463
        %1465 = vmatprep.mubr.f32.mxu0 %v1077
        %1466 = vmatmul.mubr.f32.gmra.mrb[0].mxu0 %v1076
        %v1467 = vpop.f32.mrb[0].mxu0
        %v1468 = vadd.f32 %v1355, %v1467
        %v1469 = vpop.f32.mrb[0].mxu0
        %v1470 = vadd.f32 %v1357, %v1469
        %1471 = vmatprep.mubr.f32.mxu0 %v1081
        %1472 = vmatmul.mubr.f32.gmra.mrb[0].mxu0 %v1080
        %v1473 = vpop.f32.mrb[0].mxu0
        %v1474 = vadd.f32 %v1361, %v1473
        %v1475 = vpop.f32.mrb[0].mxu0
        %v1476 = vadd.f32 %v1363, %v1475
        %1477 = vmatprep.mubr.f32.mxu0 %v1085
        %1478 = vmatmul.mubr.f32.gmra.mrb[0].mxu0 %v1084
        %v1479 = vpop.f32.mrb[0].mxu0
        %v1480 = vadd.f32 %v1367, %v1479
        %v1481 = vpop.f32.mrb[0].mxu0
        %v1482 = vadd.f32 %v1369, %v1481
        %1483 = vmatprep.mubr.f32.mxu0 %v1089
        %1484 = vmatmul.mubr.f32.gmra.mrb[0].mxu0 %v1088
        %v1485 = vpop.f32.mrb[0].mxu0
        %v1486 = vadd.f32 %v1373, %v1485
        %v1487 = vpop.f32.mrb[0].mxu0
        %v1488 = vadd.f32 %v1375, %v1487
        %1489 = vmatprep.mubr.f32.mxu0 %v1093
        %1490 = vmatmul.mubr.f32.gmra.mrb[0].mxu0 %v1092
        %v1491 = vpop.f32.mrb[0].mxu0
        %v1492 = vadd.f32 %v1379, %v1491
        %v1493 = vpop.f32.mrb[0].mxu0
        %v1494 = vadd.f32 %v1381, %v1493
        %1495 = vdwg.mxu0
        %v1496 = vadd.f32 %v1126, %v1450
        %v1497 = vadd.f32 %v1127, %v1452
        %v1498 = vadd.f32 %v1128, %v1456
        %v1499 = vadd.f32 %v1129, %v1458
        %v1500 = vadd.f32 %v1130, %v1462
        %v1501 = vadd.f32 %v1131, %v1464
        %v1502 = vadd.f32 %v1132, %v1468
        %v1503 = vadd.f32 %v1133, %v1470
        %v1504 = vadd.f32 %v1134, %v1474
        %v1505 = vadd.f32 %v1135, %v1476
        %v1506 = vadd.f32 %v1136, %v1480
        %v1507 = vadd.f32 %v1137, %v1482
        %v1508 = vadd.f32 %v1138, %v1486
        %v1509 = vadd.f32 %v1139, %v1488
        %v1510 = vadd.f32 %v1140, %v1492
        %v1511 = vadd.f32 %v1141, %v1494
        %1512 = vst [vmem:[#allocation2] sm:$0xff] %v1496
        %1513 = vst [vmem:[#allocation2 + $0x8] sm:$0xff] %v1497
        %1514 = vst [vmem:[#allocation2 + $0x10] sm:$0xff] %v1498
        %1515 = vst [vmem:[#allocation2 + $0x18] sm:$0xff] %v1499
        %1516 = vst [vmem:[#allocation2 + $0x20] sm:$0xff] %v1500
        %1517 = vst [vmem:[#allocation2 + $0x28] sm:$0xff] %v1501
        %1518 = vst [vmem:[#allocation2 + $0x30] sm:$0xff] %v1502
        %1519 = vst [vmem:[#allocation2 + $0x38] sm:$0xff] %v1503
        %1520 = vst [vmem:[#allocation2 + $0x40] sm:$0xff] %v1504
        %1521 = vst [vmem:[#allocation2 + $0x48] sm:$0xff] %v1505
        %1522 = vst [vmem:[#allocation2 + $0x50] sm:$0xff] %v1506
        %1523 = vst [vmem:[#allocation2 + $0x58] sm:$0xff] %v1507
        %1524 = vst [vmem:[#allocation2 + $0x60] sm:$0xff] %v1508
        %1525 = vst [vmem:[#allocation2 + $0x68] sm:$0xff] %v1509
        %1526 = vst [vmem:[#allocation2 + $0x70] sm:$0xff] %v1510
        %1527 = vst [vmem:[#allocation2 + $0x78] sm:$0xff] %v1511
        %v1528 = vld [vmem:[#allocation3] sm:$0xff]
        %v1529 = vld [vmem:[#allocation3 + $0x8] sm:$0xff]
        %v1530 = vld [vmem:[#allocation3 + $0x10] sm:$0xff]
        %v1531 = vld [vmem:[#allocation3 + $0x18] sm:$0xff]
        %v1532 = vld [vmem:[#allocation3 + $0x20] sm:$0xff]
        %v1533 = vld [vmem:[#allocation3 + $0x28] sm:$0xff]
        %v1534 = vld [vmem:[#allocation3 + $0x30] sm:$0xff]
        %v1535 = vld [vmem:[#allocation3 + $0x38] sm:$0xff]
        %v1536 = vadd.f32 %v1062, %v1063
        %v1537 = vadd.f32 %v1536, %v1064
        %v1538 = vadd.f32 %v1537, %v1065
        %1539 = vadd.xlane.f32.xlu0 %v1538
        %v1540 = vpop.xlane.xlu0 %1539
        %v1541 = vadd.f32 %v1066, %v1067
        %v1542 = vadd.f32 %v1541, %v1068
        %v1543 = vadd.f32 %v1542, %v1069
        %1544 = vadd.xlane.f32.xlu0 %v1543
        %v1545 = vpop.xlane.xlu0 %1544
        %v1546 = vadd.f32 %v1070, %v1071
        %v1547 = vadd.f32 %v1546, %v1072
        %v1548 = vadd.f32 %v1547, %v1073
        %1549 = vadd.xlane.f32.xlu0 %v1548
        %v1550 = vpop.xlane.xlu0 %1549
        %v1551 = vadd.f32 %v1074, %v1075
        %v1552 = vadd.f32 %v1551, %v1076
        %v1553 = vadd.f32 %v1552, %v1077
        %1554 = vadd.xlane.f32.xlu0 %v1553
        %v1555 = vpop.xlane.xlu0 %1554
        %v1556 = vadd.f32 %v1078, %v1079
        %v1557 = vadd.f32 %v1556, %v1080
        %v1558 = vadd.f32 %v1557, %v1081
        %1559 = vadd.xlane.f32.xlu0 %v1558
        %v1560 = vpop.xlane.xlu0 %1559
        %v1561 = vadd.f32 %v1082, %v1083
        %v1562 = vadd.f32 %v1561, %v1084
        %v1563 = vadd.f32 %v1562, %v1085
        %1564 = vadd.xlane.f32.xlu0 %v1563
        %v1565 = vpop.xlane.xlu0 %1564
        %v1566 = vadd.f32 %v1086, %v1087
        %v1567 = vadd.f32 %v1566, %v1088
        %v1568 = vadd.f32 %v1567, %v1089
        %1569 = vadd.xlane.f32.xlu0 %v1568
        %v1570 = vpop.xlane.xlu0 %1569
        %v1571 = vadd.f32 %v1090, %v1091
        %v1572 = vadd.f32 %v1571, %v1092
        %v1573 = vadd.f32 %v1572, %v1093
        %1574 = vadd.xlane.f32.xlu0 %v1573
        %v1575 = vpop.xlane.xlu0 %1574
        %v1576 = vadd.f32 %v1528, %v1540
        %v1577 = vadd.f32 %v1529, %v1545
        %v1578 = vadd.f32 %v1530, %v1550
        %v1579 = vadd.f32 %v1531, %v1555
        %v1580 = vadd.f32 %v1532, %v1560
        %v1581 = vadd.f32 %v1533, %v1565
        %v1582 = vadd.f32 %v1534, %v1570
        %v1583 = vadd.f32 %v1535, %v1575
        %vm1584 = vcmask 7168
        %1585 = vst.msk [vmem:[#allocation3] sm:$0xff] %vm1584, %v1576
        %1586 = vst.msk [vmem:[#allocation3 + $0x8] sm:$0xff] %vm1584, %v1577
        %1587 = vst.msk [vmem:[#allocation3 + $0x10] sm:$0xff] %vm1584, %v1578
        %1588 = vst.msk [vmem:[#allocation3 + $0x18] sm:$0xff] %vm1584, %v1579
        %1589 = vst.msk [vmem:[#allocation3 + $0x20] sm:$0xff] %vm1584, %v1580
        %1590 = vst.msk [vmem:[#allocation3 + $0x28] sm:$0xff] %vm1584, %v1581
        %1591 = vst.msk [vmem:[#allocation3 + $0x30] sm:$0xff] %vm1584, %v1582
        %1592 = vst.msk [vmem:[#allocation3 + $0x38] sm:$0xff] %vm1584, %v1583
        // Predicated region
        $region76: #{sae_forward.1} parent=58 // pred_check
          %p1593 = pneg %p581
        $region77: #{sae_forward.1} parent=58 // pred_check_branch
          %1595 = sbr.rel (%p1593) target = $region79
        $region78: #{sae_forward.1} parent=58 // pred_region
          %v1596 = vld [vmem:[%s555] sm:$0x3]
          %v1597 = vld [vmem:[#allocation2] sm:$0xff]
          %v1598 = vld [vmem:[#allocation2 + $0x8] sm:$0xff]
          %v1599 = vld [vmem:[#allocation2 + $0x10] sm:$0xff]
          %v1600 = vld [vmem:[#allocation2 + $0x18] sm:$0xff]
          %v1601 = vld [vmem:[#allocation2 + $0x20] sm:$0xff]
          %v1602 = vld [vmem:[#allocation2 + $0x28] sm:$0xff]
          %v1603 = vld [vmem:[#allocation2 + $0x30] sm:$0xff]
          %v1604 = vld [vmem:[#allocation2 + $0x38] sm:$0xff]
          %v1605 = vld [vmem:[#allocation2 + $0x40] sm:$0xff]
          %v1606 = vld [vmem:[#allocation2 + $0x48] sm:$0xff]
          %v1607 = vld [vmem:[#allocation2 + $0x50] sm:$0xff]
          %v1608 = vld [vmem:[#allocation2 + $0x58] sm:$0xff]
          %v1609 = vld [vmem:[#allocation2 + $0x60] sm:$0xff]
          %v1610 = vld [vmem:[#allocation2 + $0x68] sm:$0xff]
          %v1611 = vld [vmem:[#allocation2 + $0x70] sm:$0xff]
          %v1612 = vld [vmem:[#allocation2 + $0x78] sm:$0xff]
          %v1614 = vlaneseq
          %v1615 = vshrl.u32 %v1614, 7
          %v1616 = vsub.s32 0, %v1615
          %v1617 = vrot.slane %v1596, %v1616
          %v1618 = vlaneseq
          %v1619 = vshrl.u32 %v1618, 7
          %v1620 = vsub.s32 1, %v1619
          %v1621 = vrot.slane %v1596, %v1620
          %v1624 = vadd.f32 %v1597, %v1617
          %v1625 = vadd.f32 %v1598, %v1621
          %v1626 = vadd.f32 %v1599, %v1617
          %v1627 = vadd.f32 %v1600, %v1621
          %v1628 = vadd.f32 %v1601, %v1617
          %v1629 = vadd.f32 %v1602, %v1621
          %v1630 = vadd.f32 %v1603, %v1617
          %v1631 = vadd.f32 %v1604, %v1621
          %v1632 = vadd.f32 %v1605, %v1617
          %v1633 = vadd.f32 %v1606, %v1621
          %v1634 = vadd.f32 %v1607, %v1617
          %v1635 = vadd.f32 %v1608, %v1621
          %v1636 = vadd.f32 %v1609, %v1617
          %v1637 = vadd.f32 %v1610, %v1621
          %v1638 = vadd.f32 %v1611, %v1617
          %v1639 = vadd.f32 %v1612, %v1621
          %1640 = vst [vmem:[%s516] sm:$0xff] %v1624
          %1641 = vst [vmem:[%s516 + $0x8] sm:$0xff] %v1625
          %1642 = vst [vmem:[%s516 + $0x10] sm:$0xff] %v1626
          %1643 = vst [vmem:[%s516 + $0x18] sm:$0xff] %v1627
          %1644 = vst [vmem:[%s516 + $0x20] sm:$0xff] %v1628
          %1645 = vst [vmem:[%s516 + $0x28] sm:$0xff] %v1629
          %1646 = vst [vmem:[%s516 + $0x30] sm:$0xff] %v1630
          %1647 = vst [vmem:[%s516 + $0x38] sm:$0xff] %v1631
          %1648 = vst [vmem:[%s516 + $0x40] sm:$0xff] %v1632
          %1649 = vst [vmem:[%s516 + $0x48] sm:$0xff] %v1633
          %1650 = vst [vmem:[%s516 + $0x50] sm:$0xff] %v1634
          %1651 = vst [vmem:[%s516 + $0x58] sm:$0xff] %v1635
          %1652 = vst [vmem:[%s516 + $0x60] sm:$0xff] %v1636
          %1653 = vst [vmem:[%s516 + $0x68] sm:$0xff] %v1637
          %1654 = vst [vmem:[%s516 + $0x70] sm:$0xff] %v1638
          %1655 = vst [vmem:[%s516 + $0x78] sm:$0xff] %v1639
          %v1656 = vld [vmem:[%s447] sm:$0xff]
          %v1657 = vld [vmem:[%s447 + $0x8] sm:$0xff]
          %v1658 = vld [vmem:[%s447 + $0x10] sm:$0xff]
          %v1659 = vld [vmem:[%s447 + $0x18] sm:$0xff]
          %v1660 = vld [vmem:[%s447 + $0x20] sm:$0xff]
          %v1661 = vld [vmem:[%s447 + $0x28] sm:$0xff]
          %v1662 = vld [vmem:[%s447 + $0x30] sm:$0xff]
          %v1663 = vld [vmem:[%s447 + $0x38] sm:$0xff]
          %v1664 = vld [vmem:[%s447 + $0x40] sm:$0xff]
          %v1665 = vld [vmem:[%s447 + $0x48] sm:$0xff]
          %v1666 = vld [vmem:[%s447 + $0x50] sm:$0xff]
          %v1667 = vld [vmem:[%s447 + $0x58] sm:$0xff]
          %v1668 = vld [vmem:[%s447 + $0x60] sm:$0xff]
          %v1669 = vld [vmem:[%s447 + $0x68] sm:$0xff]
          %v1670 = vld [vmem:[%s447 + $0x70] sm:$0xff]
          %v1671 = vld [vmem:[%s447 + $0x78] sm:$0xff]
          %v1672 = vsub.f32 %v1656, %v1624
          %v1673 = vsub.f32 %v1657, %v1625
          %v1674 = vsub.f32 %v1658, %v1626
          %v1675 = vsub.f32 %v1659, %v1627
          %v1676 = vsub.f32 %v1660, %v1628
          %v1677 = vsub.f32 %v1661, %v1629
          %v1678 = vsub.f32 %v1662, %v1630
          %v1679 = vsub.f32 %v1663, %v1631
          %v1680 = vsub.f32 %v1664, %v1632
          %v1681 = vsub.f32 %v1665, %v1633
          %v1682 = vsub.f32 %v1666, %v1634
          %v1683 = vsub.f32 %v1667, %v1635
          %v1684 = vsub.f32 %v1668, %v1636
          %v1685 = vsub.f32 %v1669, %v1637
          %v1686 = vsub.f32 %v1670, %v1638
          %v1687 = vsub.f32 %v1671, %v1639
          %v1688 = vmul.f32 %v1672, %v1672
          %v1689 = vmul.f32 %v1673, %v1673
          %v1690 = vmul.f32 %v1674, %v1674
          %v1691 = vmul.f32 %v1675, %v1675
          %v1692 = vmul.f32 %v1676, %v1676
          %v1693 = vmul.f32 %v1677, %v1677
          %v1694 = vmul.f32 %v1678, %v1678
          %v1695 = vmul.f32 %v1679, %v1679
          %v1696 = vmul.f32 %v1680, %v1680
          %v1697 = vmul.f32 %v1681, %v1681
          %v1698 = vmul.f32 %v1682, %v1682
          %v1699 = vmul.f32 %v1683, %v1683
          %v1700 = vmul.f32 %v1684, %v1684
          %v1701 = vmul.f32 %v1685, %v1685
          %v1702 = vmul.f32 %v1686, %v1686
          %v1703 = vmul.f32 %v1687, %v1687
          %v1704 = vadd.f32 %v1688, %v1689
          %1705 = vadd.xlane.f32.xlu0 %v1704
          %v1706 = vpop.xlane.xlu0 %1705
          %v1707 = vadd.f32 %v1690, %v1691
          %1708 = vadd.xlane.f32.xlu0 %v1707
          %v1709 = vpop.xlane.xlu0 %1708
          %v1710 = vadd.f32 %v1692, %v1693
          %1711 = vadd.xlane.f32.xlu0 %v1710
          %v1712 = vpop.xlane.xlu0 %1711
          %v1713 = vadd.f32 %v1694, %v1695
          %1714 = vadd.xlane.f32.xlu0 %v1713
          %v1715 = vpop.xlane.xlu0 %1714
          %v1716 = vadd.f32 %v1696, %v1697
          %1717 = vadd.xlane.f32.xlu0 %v1716
          %v1718 = vpop.xlane.xlu0 %1717
          %v1719 = vadd.f32 %v1698, %v1699
          %1720 = vadd.xlane.f32.xlu0 %v1719
          %v1721 = vpop.xlane.xlu0 %1720
          %v1722 = vadd.f32 %v1700, %v1701
          %1723 = vadd.xlane.f32.xlu0 %v1722
          %v1724 = vpop.xlane.xlu0 %1723
          %v1725 = vadd.f32 %v1702, %v1703
          %1726 = vadd.xlane.f32.xlu0 %v1725
          %v1727 = vpop.xlane.xlu0 %1726
          %v1728 = vrcp.pop 256.0
          %v1729 = vmul.f32 %v1706, %v1728
          %v1730 = vmul.f32 %v1709, %v1728
          %v1731 = vmul.f32 %v1712, %v1728
          %v1732 = vmul.f32 %v1715, %v1728
          %v1733 = vmul.f32 %v1718, %v1728
          %v1734 = vmul.f32 %v1721, %v1728
          %v1735 = vmul.f32 %v1724, %v1728
          %v1736 = vmul.f32 %v1727, %v1728
          %1737 = vst.msk [vmem:[%s569] sm:$0xff] %vm1584, %v1729
          %1738 = vst.msk [vmem:[%s569 + $0x8] sm:$0xff] %vm1584, %v1730
          %1739 = vst.msk [vmem:[%s569 + $0x10] sm:$0xff] %vm1584, %v1731
          %1740 = vst.msk [vmem:[%s569 + $0x18] sm:$0xff] %vm1584, %v1732
          %1741 = vst.msk [vmem:[%s569 + $0x20] sm:$0xff] %vm1584, %v1733
          %1742 = vst.msk [vmem:[%s569 + $0x28] sm:$0xff] %vm1584, %v1734
          %1743 = vst.msk [vmem:[%s569 + $0x30] sm:$0xff] %vm1584, %v1735
          %1744 = vst.msk [vmem:[%s569 + $0x38] sm:$0xff] %vm1584, %v1736
          %v1745 = vld [vmem:[#allocation3] sm:$0xff]
          %v1746 = vld [vmem:[#allocation3 + $0x8] sm:$0xff]
          %v1747 = vld [vmem:[#allocation3 + $0x10] sm:$0xff]
          %v1748 = vld [vmem:[#allocation3 + $0x18] sm:$0xff]
          %v1749 = vld [vmem:[#allocation3 + $0x20] sm:$0xff]
          %v1750 = vld [vmem:[#allocation3 + $0x28] sm:$0xff]
          %v1751 = vld [vmem:[#allocation3 + $0x30] sm:$0xff]
          %v1752 = vld [vmem:[#allocation3 + $0x38] sm:$0xff]
          %1753 = vst.msk [vmem:[%s579] sm:$0xff] %vm1584, %v1745
          %1754 = vst.msk [vmem:[%s579 + $0x8] sm:$0xff] %vm1584, %v1746
          %1755 = vst.msk [vmem:[%s579 + $0x10] sm:$0xff] %vm1584, %v1747
          %1756 = vst.msk [vmem:[%s579 + $0x18] sm:$0xff] %vm1584, %v1748
          %1757 = vst.msk [vmem:[%s579 + $0x20] sm:$0xff] %vm1584, %v1749
          %1758 = vst.msk [vmem:[%s579 + $0x28] sm:$0xff] %vm1584, %v1750
          %1759 = vst.msk [vmem:[%s579 + $0x30] sm:$0xff] %vm1584, %v1751
          %1760 = vst.msk [vmem:[%s579 + $0x38] sm:$0xff] %vm1584, %v1752
        $region79: #{sae_forward.1} parent=58 // pred_fallthru
          _
        %s1761 = sand.u32 %s195, 1
        %s1762 = sand.u32 %s195, 1
        %s1763 = smul.addr %s1762, 256
        %s1764 = scalar_lea.vmem [#allocation10], %s1763
        %s1765 = sand.u32 %s223, 1
        %s1766 = sand.u32 %s223, 1
        %s1767 = smul.addr %s1766, 128
        %s1768 = scalar_lea.vmem [#allocation11], %s1767
        %s1769 = smul.u32 8, %s32
        %p1770 = scmp.lt.s32.totalorder %s31, 1
        %s1771 = scalar_select %p1770, %s31, 1
        %p1772 = scmp.lt.s32.totalorder %s1769, 7
        %s1773 = scalar_select %p1772, %s1769, 7
        %s1774 = smul.addr %s1771, 8
        %s1775 = sadd.s32 %s1773, %s1774
        %s1776 = smul.addr %s1775, 8
        %s1777 = scalar_lea.vmem %s7, %s1776
        %s1778 = smul.u32 8, %s32
        %p1779 = scmp.lt.s32.totalorder %s31, 1
        %s1780 = scalar_select %p1779, %s31, 1
        %p1781 = scmp.lt.s32.totalorder %s1778, 7
        %s1782 = scalar_select %p1781, %s1778, 7
        %s1783 = smul.addr %s1780, 8
        %s1784 = sadd.s32 %s1782, %s1783
        %s1785 = smul.addr %s1784, 8
        %s1786 = scalar_lea.vmem %s8, %s1785
        // Predicated region
        $region80: #{sae_forward.1} parent=58 // pred_check
          %p1787 = pneg %p205
        $region81: #{sae_forward.1} parent=58 // pred_check_branch
          %1789 = sbr.rel (%p1787) target = $region83
        $region82: #{sae_forward.1} parent=58 // pred_region
          %s1790 = sadd.s32 %s31, %s33
          %s1791 = smul.u32 8, %s32
          %s1792 = smul.u32 4, %s1790
          %s1793 = smul.addr %s1791, 8
          %s1794 = sadd.s32 %s1792, %s1793
          %s1795 = smul.addr %s1794, 8
          %s1796 = scalar_lea.vmem %s5, %s1795
          // Predicated region
          $region84: #{sae_forward.1} parent=82 // pred_check
            _
          $region85: #{sae_forward.1} parent=82 // pred_check_branch
            %1798 = sbr.rel (0) target = $region87
          $region86: #{sae_forward.1} parent=82 // pred_region
            // Predicated region
            $region88: #{sae_forward.1} parent=86 // pred_check
              _
            $region89: #{sae_forward.1} parent=86 // pred_check_branch
              %1800 = sbr.rel (0) target = $region91
            $region90: #{sae_forward.1} parent=86 // pred_region
              loop: start=0, step=1, limit=1
              $region92: #{sae_forward.1} parent=90 // loop_pre_header
                _
              $region93: #{sae_forward.1} parent=90 // loop_header
                %s1802 = sphi 0, %s1806
                %p1803 = scmp.ge.s32.totalorder %s1802, 1
                %s1807 = sphi %s1764, %s1764
                %s1808 = sphi %s1796, %s1796
              $region94: #{sae_forward.1} parent=90 // loop_header_branch
                %1805 = sbr.rel (%p1803) target = $region98
              $region95: #{sae_forward.1} parent=90 // loop_body
                %v1809 = vld [vmem:[%s1807] sm:$0xff]
                %1810 = vst [vmem:[%s1808] sm:$0xff] %v1809
                %v1811 = vld [vmem:[%s1807 + $0x8] sm:$0xff]
                %1812 = vst [vmem:[%s1808 + $0x8] sm:$0xff] %v1811
                %v1813 = vld [vmem:[%s1807 + $0x10] sm:$0xff]
                %1814 = vst [vmem:[%s1808 + $0x10] sm:$0xff] %v1813
                %v1815 = vld [vmem:[%s1807 + $0x18] sm:$0xff]
                %1816 = vst [vmem:[%s1808 + $0x18] sm:$0xff] %v1815
                %v1817 = vld [vmem:[%s1807 + $0x20] sm:$0xff]
                %1818 = vst [vmem:[%s1808 + $0x40] sm:$0xff] %v1817
                %v1819 = vld [vmem:[%s1807 + $0x28] sm:$0xff]
                %1820 = vst [vmem:[%s1808 + $0x48] sm:$0xff] %v1819
                %v1821 = vld [vmem:[%s1807 + $0x30] sm:$0xff]
                %1822 = vst [vmem:[%s1808 + $0x50] sm:$0xff] %v1821
                %v1823 = vld [vmem:[%s1807 + $0x38] sm:$0xff]
                %1824 = vst [vmem:[%s1808 + $0x58] sm:$0xff] %v1823
                %v1825 = vld [vmem:[%s1807 + $0x40] sm:$0xff]
                %1826 = vst [vmem:[%s1808 + $0x80] sm:$0xff] %v1825
                %v1827 = vld [vmem:[%s1807 + $0x48] sm:$0xff]
                %1828 = vst [vmem:[%s1808 + $0x88] sm:$0xff] %v1827
                %v1829 = vld [vmem:[%s1807 + $0x50] sm:$0xff]
                %1830 = vst [vmem:[%s1808 + $0x90] sm:$0xff] %v1829
                %v1831 = vld [vmem:[%s1807 + $0x58] sm:$0xff]
                %1832 = vst [vmem:[%s1808 + $0x98] sm:$0xff] %v1831
                %v1833 = vld [vmem:[%s1807 + $0x60] sm:$0xff]
                %1834 = vst [vmem:[%s1808 + $0xc0] sm:$0xff] %v1833
                %v1835 = vld [vmem:[%s1807 + $0x68] sm:$0xff]
                %1836 = vst [vmem:[%s1808 + $0xc8] sm:$0xff] %v1835
                %v1837 = vld [vmem:[%s1807 + $0x70] sm:$0xff]
                %1838 = vst [vmem:[%s1808 + $0xd0] sm:$0xff] %v1837
                %v1839 = vld [vmem:[%s1807 + $0x78] sm:$0xff]
                %1840 = vst [vmem:[%s1808 + $0xd8] sm:$0xff] %v1839
                %v1841 = vld [vmem:[%s1807 + $0x80] sm:$0xff]
                %1842 = vst [vmem:[%s1808 + $0x100] sm:$0xff] %v1841
                %v1843 = vld [vmem:[%s1807 + $0x88] sm:$0xff]
                %1844 = vst [vmem:[%s1808 + $0x108] sm:$0xff] %v1843
                %v1845 = vld [vmem:[%s1807 + $0x90] sm:$0xff]
                %1846 = vst [vmem:[%s1808 + $0x110] sm:$0xff] %v1845
                %v1847 = vld [vmem:[%s1807 + $0x98] sm:$0xff]
                %1848 = vst [vmem:[%s1808 + $0x118] sm:$0xff] %v1847
                %v1849 = vld [vmem:[%s1807 + $0xa0] sm:$0xff]
                %1850 = vst [vmem:[%s1808 + $0x140] sm:$0xff] %v1849
                %v1851 = vld [vmem:[%s1807 + $0xa8] sm:$0xff]
                %1852 = vst [vmem:[%s1808 + $0x148] sm:$0xff] %v1851
                %v1853 = vld [vmem:[%s1807 + $0xb0] sm:$0xff]
                %1854 = vst [vmem:[%s1808 + $0x150] sm:$0xff] %v1853
                %v1855 = vld [vmem:[%s1807 + $0xb8] sm:$0xff]
                %1856 = vst [vmem:[%s1808 + $0x158] sm:$0xff] %v1855
                %v1857 = vld [vmem:[%s1807 + $0xc0] sm:$0xff]
                %1858 = vst [vmem:[%s1808 + $0x180] sm:$0xff] %v1857
                %v1859 = vld [vmem:[%s1807 + $0xc8] sm:$0xff]
                %1860 = vst [vmem:[%s1808 + $0x188] sm:$0xff] %v1859
                %v1861 = vld [vmem:[%s1807 + $0xd0] sm:$0xff]
                %1862 = vst [vmem:[%s1808 + $0x190] sm:$0xff] %v1861
                %v1863 = vld [vmem:[%s1807 + $0xd8] sm:$0xff]
                %1864 = vst [vmem:[%s1808 + $0x198] sm:$0xff] %v1863
                %v1865 = vld [vmem:[%s1807 + $0xe0] sm:$0xff]
                %1866 = vst [vmem:[%s1808 + $0x1c0] sm:$0xff] %v1865
                %v1867 = vld [vmem:[%s1807 + $0xe8] sm:$0xff]
                %1868 = vst [vmem:[%s1808 + $0x1c8] sm:$0xff] %v1867
                %v1869 = vld [vmem:[%s1807 + $0xf0] sm:$0xff]
                %1870 = vst [vmem:[%s1808 + $0x1d0] sm:$0xff] %v1869
                %v1871 = vld [vmem:[%s1807 + $0xf8] sm:$0xff]
                %1872 = vst [vmem:[%s1808 + $0x1d8] sm:$0xff] %v1871
              $region96: #{sae_forward.1} parent=90 // loop_footer
                %s1806 = sadd.s32 1, %s1802
              $region97: #{sae_forward.1} parent=90 // loop_footer_branch
                %1801 = sbr.rel target = $region93
              $region98: #{sae_forward.1} parent=90 // loop_exit
                _
            $region91: #{sae_forward.1} parent=86 // pred_fallthru
              _
            // Predicated region
            $region99: #{sae_forward.1} parent=86 // pred_check
              _
            $region100: #{sae_forward.1} parent=86 // pred_check_branch
              %1874 = sbr.rel target = $region102
            $region101: #{sae_forward.1} parent=86 // pred_region
              _
            $region102: #{sae_forward.1} parent=86 // pred_fallthru
              _
          $region87: #{sae_forward.1} parent=82 // pred_fallthru
            _
          %1875 = vnop
        $region83: #{sae_forward.1} parent=58 // pred_fallthru
          _
        // Predicated region
        $region103: #{sae_forward.1} parent=58 // pred_check
          %p1876 = pneg %p233
        $region104: #{sae_forward.1} parent=58 // pred_check_branch
          %1878 = sbr.rel (%p1876) target = $region106
        $region105: #{sae_forward.1} parent=58 // pred_region
          %s1879 = smul.u32 8, %s32
          %s1880 = smul.u32 2, %s31
          %s1881 = smul.addr %s1879, 4
          %s1882 = sadd.s32 %s1880, %s1881
          %s1883 = smul.addr %s1882, 8
          %s1884 = scalar_lea.vmem %s6, %s1883
          // Predicated region
          $region107: #{sae_forward.1} parent=105 // pred_check
            _
          $region108: #{sae_forward.1} parent=105 // pred_check_branch
            %1886 = sbr.rel (0) target = $region110
          $region109: #{sae_forward.1} parent=105 // pred_region
            // Predicated region
            $region111: #{sae_forward.1} parent=109 // pred_check
              _
            $region112: #{sae_forward.1} parent=109 // pred_check_branch
              %1888 = sbr.rel (0) target = $region114
            $region113: #{sae_forward.1} parent=109 // pred_region
              loop: start=0, step=1, limit=1
              $region115: #{sae_forward.1} parent=113 // loop_pre_header
                _
              $region116: #{sae_forward.1} parent=113 // loop_header
                %s1890 = sphi 0, %s1894
                %p1891 = scmp.ge.s32.totalorder %s1890, 1
                %s1895 = sphi %s1768, %s1768
                %s1896 = sphi %s1884, %s1884
              $region117: #{sae_forward.1} parent=113 // loop_header_branch
                %1893 = sbr.rel (%p1891) target = $region121
              $region118: #{sae_forward.1} parent=113 // loop_body
                %v1897 = vld [vmem:[%s1895] sm:$0xff]
                %1898 = vst [vmem:[%s1896] sm:$0xff] %v1897
                %v1899 = vld [vmem:[%s1895 + $0x8] sm:$0xff]
                %1900 = vst [vmem:[%s1896 + $0x8] sm:$0xff] %v1899
                %v1901 = vld [vmem:[%s1895 + $0x10] sm:$0xff]
                %1902 = vst [vmem:[%s1896 + $0x20] sm:$0xff] %v1901
                %v1903 = vld [vmem:[%s1895 + $0x18] sm:$0xff]
                %1904 = vst [vmem:[%s1896 + $0x28] sm:$0xff] %v1903
                %v1905 = vld [vmem:[%s1895 + $0x20] sm:$0xff]
                %1906 = vst [vmem:[%s1896 + $0x40] sm:$0xff] %v1905
                %v1907 = vld [vmem:[%s1895 + $0x28] sm:$0xff]
                %1908 = vst [vmem:[%s1896 + $0x48] sm:$0xff] %v1907
                %v1909 = vld [vmem:[%s1895 + $0x30] sm:$0xff]
                %1910 = vst [vmem:[%s1896 + $0x60] sm:$0xff] %v1909
                %v1911 = vld [vmem:[%s1895 + $0x38] sm:$0xff]
                %1912 = vst [vmem:[%s1896 + $0x68] sm:$0xff] %v1911
                %v1913 = vld [vmem:[%s1895 + $0x40] sm:$0xff]
                %1914 = vst [vmem:[%s1896 + $0x80] sm:$0xff] %v1913
                %v1915 = vld [vmem:[%s1895 + $0x48] sm:$0xff]
                %1916 = vst [vmem:[%s1896 + $0x88] sm:$0xff] %v1915
                %v1917 = vld [vmem:[%s1895 + $0x50] sm:$0xff]
                %1918 = vst [vmem:[%s1896 + $0xa0] sm:$0xff] %v1917
                %v1919 = vld [vmem:[%s1895 + $0x58] sm:$0xff]
                %1920 = vst [vmem:[%s1896 + $0xa8] sm:$0xff] %v1919
                %v1921 = vld [vmem:[%s1895 + $0x60] sm:$0xff]
                %1922 = vst [vmem:[%s1896 + $0xc0] sm:$0xff] %v1921
                %v1923 = vld [vmem:[%s1895 + $0x68] sm:$0xff]
                %1924 = vst [vmem:[%s1896 + $0xc8] sm:$0xff] %v1923
                %v1925 = vld [vmem:[%s1895 + $0x70] sm:$0xff]
                %1926 = vst [vmem:[%s1896 + $0xe0] sm:$0xff] %v1925
                %v1927 = vld [vmem:[%s1895 + $0x78] sm:$0xff]
                %1928 = vst [vmem:[%s1896 + $0xe8] sm:$0xff] %v1927
              $region119: #{sae_forward.1} parent=113 // loop_footer
                %s1894 = sadd.s32 1, %s1890
              $region120: #{sae_forward.1} parent=113 // loop_footer_branch
                %1889 = sbr.rel target = $region116
              $region121: #{sae_forward.1} parent=113 // loop_exit
                _
            $region114: #{sae_forward.1} parent=109 // pred_fallthru
              _
            // Predicated region
            $region122: #{sae_forward.1} parent=109 // pred_check
              _
            $region123: #{sae_forward.1} parent=109 // pred_check_branch
              %1930 = sbr.rel target = $region125
            $region124: #{sae_forward.1} parent=109 // pred_region
              _
            $region125: #{sae_forward.1} parent=109 // pred_fallthru
              _
          $region110: #{sae_forward.1} parent=105 // pred_fallthru
            _
          %1931 = vnop
        $region106: #{sae_forward.1} parent=58 // pred_fallthru
          _
        // Predicated region
        $region126: #{sae_forward.1} parent=58 // pred_check
          %p1932 = pneg %p261
        $region127: #{sae_forward.1} parent=58 // pred_check_branch
          %1934 = sbr.rel (%p1932) target = $region129
        $region128: #{sae_forward.1} parent=58 // pred_region
          %s1935 = smul.u32 8, %s32
        $region129: #{sae_forward.1} parent=58 // pred_fallthru
          _
        // Predicated region
        $region130: #{sae_forward.1} parent=58 // pred_check
          %p1936 = pneg %p289
        $region131: #{sae_forward.1} parent=58 // pred_check_branch
          %1938 = sbr.rel (%p1936) target = $region133
        $region132: #{sae_forward.1} parent=58 // pred_region
          %s1939 = smul.u32 8, %s32
        $region133: #{sae_forward.1} parent=58 // pred_fallthru
          _
      $region59: #{sae_forward.1} parent=5 // pred_fallthru
        _
      %p1940 = scmp.le.s32.totalorder 2, %s21
      // Predicated region
      $region134: #{sae_forward.1} parent=5 // pred_check
        %p1941 = pneg %p1940
      $region135: #{sae_forward.1} parent=5 // pred_check_branch
        %1943 = sbr.rel (%p1941) target = $region137
      $region136: #{sae_forward.1} parent=5 // pred_region
        %s1944 = ssub.s32 %s21, 2
        // Predicated region
        $region138: #{sae_forward.1} parent=136 // pred_check
          %p1945 = pneg %p211
        $region139: #{sae_forward.1} parent=136 // pred_check_branch
          %1947 = sbr.rel (%p1945) target = $region141
        $region140: #{sae_forward.1} parent=136 // pred_region
          %s1948 = sand.u32 %s196, 1
          %s1949 = sand.u32 %s196, 1
          %s1950 = smul.addr %s1949, 256
          %s1951 = scalar_lea.vmem [#allocation10], %s1950
        $region141: #{sae_forward.1} parent=136 // pred_fallthru
          _
        // Predicated region
        $region142: #{sae_forward.1} parent=136 // pred_check
          %p1952 = pneg %p239
        $region143: #{sae_forward.1} parent=136 // pred_check_branch
          %1954 = sbr.rel (%p1952) target = $region145
        $region144: #{sae_forward.1} parent=136 // pred_region
          %s1955 = sand.u32 %s224, 1
          %s1956 = sand.u32 %s224, 1
          %s1957 = smul.addr %s1956, 128
          %s1958 = scalar_lea.vmem [#allocation11], %s1957
        $region145: #{sae_forward.1} parent=136 // pred_fallthru
          _
        // Predicated region
        $region146: #{sae_forward.1} parent=136 // pred_check
          %p1959 = pneg %p267
        $region147: #{sae_forward.1} parent=136 // pred_check_branch
          %1961 = sbr.rel (%p1959) target = $region149
        $region148: #{sae_forward.1} parent=136 // pred_region
          %s1962 = smul.u32 8, %s35
          %p1963 = scmp.lt.s32.totalorder %s34, 1
          %s1964 = scalar_select %p1963, %s34, 1
          %p1965 = scmp.lt.s32.totalorder %s1962, 7
          %s1966 = scalar_select %p1965, %s1962, 7
          %s1967 = smul.addr %s1964, 8
          %s1968 = sadd.s32 %s1966, %s1967
          %s1969 = smul.addr %s1968, 8
          %s1970 = scalar_lea.vmem %s7, %s1969
        $region149: #{sae_forward.1} parent=136 // pred_fallthru
          _
        // Predicated region
        $region150: #{sae_forward.1} parent=136 // pred_check
          %p1971 = pneg %p295
        $region151: #{sae_forward.1} parent=136 // pred_check_branch
          %1973 = sbr.rel (%p1971) target = $region153
        $region152: #{sae_forward.1} parent=136 // pred_region
          %s1974 = smul.u32 8, %s35
          %p1975 = scmp.lt.s32.totalorder %s34, 1
          %s1976 = scalar_select %p1975, %s34, 1
          %p1977 = scmp.lt.s32.totalorder %s1974, 7
          %s1978 = scalar_select %p1977, %s1974, 7
          %s1979 = smul.addr %s1976, 8
          %s1980 = sadd.s32 %s1978, %s1979
          %s1981 = smul.addr %s1980, 8
          %s1982 = scalar_lea.vmem %s8, %s1981
        $region153: #{sae_forward.1} parent=136 // pred_fallthru
          _
      $region137: #{sae_forward.1} parent=5 // pred_fallthru
        _
    $region6: #{sae_forward.1} parent=1 // loop_footer
      %s25 = sadd.s32 1, %s21
    $region7: #{sae_forward.1} parent=1 // loop_footer_branch
      %20 = sbr.rel target = $region3
    $region8: #{sae_forward.1} parent=1 // loop_exit
      _
    %1983 = vsyncpa [#allocation7], 1
    %s1984 = scalar_lea.sflag [#allocation7], 1
    %1985 = vsyncpa %s1984, 1
    %1986 = vsyncpa [#allocation9], 1
    %s1987 = scalar_lea.sflag [#allocation9], 1
    %1988 = vsyncpa %s1987, 1

</llo_original>
